<compile_context>
chip_gen: v7x
topology: tpu7x:2x2x1
jax: 0.10.0
libtpu: 0.0.40
codegen_flags: <defaults>
</compile_context>

<pallas_src>
import functools
import math

import numpy as np
import jax
import jax.numpy as jnp
from jax.experimental import pallas as pl
from jax.experimental.pallas import tpu as pltpu


# ----------------------------- fused Pallas kernel ---------------------------
def _fused_forward_kernel(x_ref,
                          s1_ref, w1_ref, b1_ref,
                          s2_ref, w2_ref, b2_ref,
                          s3_ref, w3_ref, b3_ref,
                          ef_ref, f1p_ref, bf1_ref,
                          f2_ref, bf2_ref,
                          o_ref):
    """Whole network in one kernel; every operand is a small VMEM-resident tile.

    x_ref   : (B*W0, C0)          input rows ordered (batch, position)
    s{l}_ref: (3, B*Wl, B*W(l-1)) 0/1 tap-selection (stride-2 window, pad=1),
                                  block-diagonal over batch
    w{l}_ref: (3, Cin, Cout)      conv weights, one (Cin, Cout) slab per tap
    b{l}_ref: (1, Cout)
    ef_ref  : (W3, B, B*W3)       0/1 row-selection used for the flatten
    f1p_ref : (W3, Cout, H)       fc1 weight with torch's channel-major Flatten
                                  folded in
    f2_ref  : (H, H),  bf*_ref : (1, H)
    o_ref   : (B, H)
    """

    def conv_relu(h, s_ref, w_ref, b_ref):
        acc = None
        for k in range(3):                                   # 3 taps, statically unrolled
            cols = jnp.dot(s_ref[k], h, preferred_element_type=jnp.float32)
            term = jnp.dot(cols, w_ref[k], preferred_element_type=jnp.float32)
            acc = term if acc is None else acc + term
        return jnp.maximum(acc + b_ref[...], 0.0)

    h = x_ref[...]
    h = conv_relu(h, s1_ref, w1_ref, b1_ref)                 # (B*W0/2, K)
    h = conv_relu(h, s2_ref, w2_ref, b2_ref)                 # (B*W0/4, K)
    h = conv_relu(h, s3_ref, w3_ref, b3_ref)                 # (B*W0/8, K)

    # Flatten (channel-major, like torch) + fc1; the permutation is folded into
    # f1p so:  y1[b,:] = sum_w h[b*W3 + w, :] @ f1p[w]
    y1 = None
    for w in range(ef_ref.shape[0]):
        xw = jnp.dot(ef_ref[w], h, preferred_element_type=jnp.float32)        # (B, K)
        term = jnp.dot(xw, f1p_ref[w], preferred_element_type=jnp.float32)    # (B, H)
        y1 = term if y1 is None else y1 + term
    y1 = jnp.maximum(y1 + bf1_ref[...], 0.0)

    y2 = jnp.dot(y1, f2_ref[...], preferred_element_type=jnp.float32) + bf2_ref[...]
    o_ref[...] = y2.astype(o_ref.dtype)


# ------------------- trace-time constant (shape-only) builders ---------------
@functools.lru_cache(maxsize=None)
def _conv_tap_selectors(batch, w_in):
    """S[k]: (B*W_out, B*W_in) 0/1, block-diagonal over batch.
    (S[k] @ x)[b*W_out + o, :] = x[b*W_in + 2*o + k - 1, :]  (zero row = padding)."""
    w_out = w_in // 2
    s = np.zeros((3, batch * w_out, batch * w_in), np.float32)
    for k in range(3):
        for b in range(batch):
            for o in range(w_out):
                p = 2 * o + k - 1
                if 0 <= p < w_in:
                    s[k, b * w_out + o, b * w_in + p] = 1.0
    return s


@functools.lru_cache(maxsize=None)
def _flatten_row_selectors(batch, w_last):
    """E[w]: (B, B*W) 0/1 with (E[w] @ h)[b, :] = h[b*W + w, :]."""
    e = np.zeros((w_last, batch, batch * w_last), np.float32)
    for w in range(w_last):
        for b in range(batch):
            e[w, b, b * w_last + w] = 1.0
    return e


def _full_vmem_spec(arr):
    zeros = (0,) * arr.ndim
    return pl.BlockSpec(arr.shape, lambda i, _z=zeros: _z)


# ------------------------------- forward pass --------------------------------
@jax.jit
def model_forward(params, state, action=None):
    """state: (B, C, W) float32 NCW. `action` is ignored (as in the torch model)."""
    del action
    B, C, W = state.shape
    assert W % 8 == 0, "width must be divisible by 8 (three stride-2 convs)"
    K = params["c1_w"].shape[0]               # kernels_count
    H = params["f1_b"].shape[0]               # hidden_count
    W3 = W // 8                               # width after the three convs
    assert params["f1_w"].shape[0] == K * W3

    # shape-only selection constants (built with numpy at trace time, cached)
    s1 = jnp.asarray(_conv_tap_selectors(B, W))
    s2 = jnp.asarray(_conv_tap_selectors(B, W // 2))
    s3 = jnp.asarray(_conv_tap_selectors(B, W // 4))
    ef = jnp.asarray(_flatten_row_selectors(B, W3))

    # weight-layout prep (tiny ops, fused into the jit program)
    x2d = jnp.transpose(state, (0, 2, 1)).reshape(B * W, C)   # rows = (batch, position)
    w1 = jnp.transpose(params["c1_w"], (2, 1, 0))             # (3, C, K)
    w2 = jnp.transpose(params["c2_w"], (2, 1, 0))             # (3, K, K)
    w3 = jnp.transpose(params["c3_w"], (2, 1, 0))             # (3, K, K)
    b1 = params["c1_b"].reshape(1, K)
    b2 = params["c2_b"].reshape(1, K)
    b3 = params["c3_b"].reshape(1, K)
    # fold torch's channel-major Flatten into fc1: f1p[w, c, h] = f1_w[c*W3 + w, h]
    f1p = jnp.transpose(params["f1_w"].reshape(K, W3, H), (1, 0, 2))
    bf1 = params["f1_b"].reshape(1, H)
    f2 = params["f2_w"]
    bf2 = params["f2_b"].reshape(1, H)

    args = (x2d, s1, w1, b1, s2, w2, b2, s3, w3, b3, ef, f1p, bf1, f2, bf2)
    return pl.pallas_call(
        _fused_forward_kernel,
        out_shape=jax.ShapeDtypeStruct((B, H), jnp.float32),
        grid=(1,),
        in_specs=[_full_vmem_spec(a) for a in args],
        out_specs=pl.BlockSpec((B, H), lambda i: (0, 0)),
        compiler_params=pltpu.CompilerParams(
            dimension_semantics=("arbitrary",)),
    )(*args)


# --------------------------- parameter construction --------------------------
def xavier_uniform(key, shape, fan_in, fan_out):
    bound = math.sqrt(6.0 / (fan_in + fan_out))
    return jax.random.uniform(key, shape, jnp.float32, -bound, bound)


def bias_uniform(key, shape, fan_in):
    bound = 1.0 / math.sqrt(fan_in)
    return jax.random.uniform(key, shape, jnp.float32, -bound, bound)


def init_params(key, channels, width, kernels_count=32, hidden_count=128):
    fc_count = kernels_count * width // 8
    ks = jax.random.split(key, 10)
    p = {}
    # conv1: (K, C, 3) torch layout
    p["c1_w"] = xavier_uniform(ks[0], (kernels_count, channels, 3),
                               channels * 3, kernels_count * 3)
    p["c1_b"] = bias_uniform(ks[1], (kernels_count,), channels * 3)
    # conv2 / conv3: (K, K, 3)
    p["c2_w"] = xavier_uniform(ks[2], (kernels_count, kernels_count, 3),
                               kernels_count * 3, kernels_count * 3)
    p["c2_b"] = bias_uniform(ks[3], (kernels_count,), kernels_count * 3)
    p["c3_w"] = xavier_uniform(ks[4], (kernels_count, kernels_count, 3),
                               kernels_count * 3, kernels_count * 3)
    p["c3_b"] = bias_uniform(ks[5], (kernels_count,), kernels_count * 3)
    # fc1: stored as (fc_count, hidden) so y = x @ f1_w  (x uses torch flatten order)
    p["f1_w"] = xavier_uniform(ks[6], (fc_count, hidden_count),
                               fc_count, hidden_count)
    p["f1_b"] = bias_uniform(ks[7], (hidden_count,), fc_count)
    # fc2: (hidden, hidden)
    p["f2_w"] = xavier_uniform(ks[8], (hidden_count, hidden_count),
                               hidden_count, hidden_count)
    p["f2_b"] = bias_uniform(ks[9], (hidden_count,), hidden_count)
    return p


# --------------------------- pure-JAX reference -------------------------------
def reference_forward(params, state):
    prec = jax.lax.Precision.HIGHEST

    def conv(x, w, b):
        y = jax.lax.conv_general_dilated(
            x, w, window_strides=(2,), padding=[(1, 1)],
            dimension_numbers=("NCH", "OIH", "NCH"), precision=prec)
        return jax.nn.relu(y + b[None, :, None])

    x = conv(state, params["c1_w"], params["c1_b"])
    x = conv(x, params["c2_w"], params["c2_b"])
    x = conv(x, params["c3_w"], params["c3_b"])
    x = x.reshape(x.shape[0], -1)                             # channel-major flatten
    x = jax.nn.relu(jnp.dot(x, params["f1_w"], precision=prec) + params["f1_b"])
    return jnp.dot(x, params["f2_w"], precision=prec) + params["f2_b"]


# ---------------------------------- main --------------------------------------
if __name__ == "__main__":
    # input_shape = (channels, width) = (4, 32); kernels_count=32, hidden_count=128
    channels, width = 4, 32
    kernels_count, hidden_count = 32, 128
    batch = 2

    key = jax.random.PRNGKey(0)
    k_params, k_state, k_action = jax.random.split(key, 3)

    params = init_params(k_params, channels, width, kernels_count, hidden_count)
    state = jax.random.normal(k_state, (batch, channels, width), jnp.float32)
    action = jax.random.normal(k_action, (batch, 8), jnp.float32)  # unused, mirrors torch signature

    out = model_forward(params, state, action)
    out = jax.block_until_ready(out)
    assert out.shape == (batch, hidden_count), out.shape

    ref = jax.block_until_ready(reference_forward(params, state))
    max_err = float(jnp.max(jnp.abs(out - ref)))
    assert max_err < 2e-2, f"kernel/reference mismatch: max_err={max_err}"

    print("KERNEL_OK")
</pallas_src>

<mosaic_0001>
module attributes {stable_mosaic.version = 11 : i64} {
  func.func @_fused_forward_kernel(%arg0: i32, %arg1: memref<64x4xf32, #tpu.memory_space<vmem>>, %arg2: memref<3x32x64xf32, #tpu.memory_space<vmem>>, %arg3: memref<3x4x32xf32, #tpu.memory_space<vmem>>, %arg4: memref<1x32xf32, #tpu.memory_space<vmem>>, %arg5: memref<3x16x32xf32, #tpu.memory_space<vmem>>, %arg6: memref<3x32x32xf32, #tpu.memory_space<vmem>>, %arg7: memref<1x32xf32, #tpu.memory_space<vmem>>, %arg8: memref<3x8x16xf32, #tpu.memory_space<vmem>>, %arg9: memref<3x32x32xf32, #tpu.memory_space<vmem>>, %arg10: memref<1x32xf32, #tpu.memory_space<vmem>>, %arg11: memref<4x2x8xf32, #tpu.memory_space<vmem>>, %arg12: memref<4x32x128xf32, #tpu.memory_space<vmem>>, %arg13: memref<1x128xf32, #tpu.memory_space<vmem>>, %arg14: memref<128x128xf32, #tpu.memory_space<vmem>>, %arg15: memref<1x128xf32, #tpu.memory_space<vmem>>, %arg16: memref<2x128xf32, #tpu.memory_space<vmem>>) attributes {dimension_semantics = [#tpu.dimension_semantics<arbitrary>], iteration_bounds = array<i64: 1>, scalar_prefetch = 0 : i64, scratch_operands = 0 : i64, tpu.core_type = #tpu.core_type<tc>, window_params = [{pipeline_mode = #tpu.pipeline_mode<synchronous>, transform_indices = @transform_0, window_bounds = array<i64: 64, 4>}, {pipeline_mode = #tpu.pipeline_mode<synchronous>, transform_indices = @transform_1, window_bounds = array<i64: 3, 32, 64>}, {pipeline_mode = #tpu.pipeline_mode<synchronous>, transform_indices = @transform_2, window_bounds = array<i64: 3, 4, 32>}, {pipeline_mode = #tpu.pipeline_mode<synchronous>, transform_indices = @transform_3, window_bounds = array<i64: 1, 32>}, {pipeline_mode = #tpu.pipeline_mode<synchronous>, transform_indices = @transform_4, window_bounds = array<i64: 3, 16, 32>}, {pipeline_mode = #tpu.pipeline_mode<synchronous>, transform_indices = @transform_5, window_bounds = array<i64: 3, 32, 32>}, {pipeline_mode = #tpu.pipeline_mode<synchronous>, transform_indices = @transform_6, window_bounds = array<i64: 1, 32>}, {pipeline_mode = #tpu.pipeline_mode<synchronous>, transform_indices = @transform_7, window_bounds = array<i64: 3, 8, 16>}, {pipeline_mode = #tpu.pipeline_mode<synchronous>, transform_indices = @transform_8, window_bounds = array<i64: 3, 32, 32>}, {pipeline_mode = #tpu.pipeline_mode<synchronous>, transform_indices = @transform_9, window_bounds = array<i64: 1, 32>}, {pipeline_mode = #tpu.pipeline_mode<synchronous>, transform_indices = @transform_10, window_bounds = array<i64: 4, 2, 8>}, {pipeline_mode = #tpu.pipeline_mode<synchronous>, transform_indices = @transform_11, window_bounds = array<i64: 4, 32, 128>}, {pipeline_mode = #tpu.pipeline_mode<synchronous>, transform_indices = @transform_12, window_bounds = array<i64: 1, 128>}, {pipeline_mode = #tpu.pipeline_mode<synchronous>, transform_indices = @transform_13, window_bounds = array<i64: 128, 128>}, {pipeline_mode = #tpu.pipeline_mode<synchronous>, transform_indices = @transform_14, window_bounds = array<i64: 1, 128>}, {pipeline_mode = #tpu.pipeline_mode<synchronous>, transform_indices = @transform_15, window_bounds = array<i64: 2, 128>}]} {
    %c0 = arith.constant 0 : index
    %c0_0 = arith.constant 0 : index
    %0 = vector.load %arg1[%c0, %c0_0] : memref<64x4xf32, #tpu.memory_space<vmem>>, vector<64x4xf32>
    %c0_1 = arith.constant 0 : index
    %c0_2 = arith.constant 0 : index
    %c0_3 = arith.constant 0 : index
    %1 = vector.load %arg2[%c0_1, %c0_2, %c0_3] : memref<3x32x64xf32, #tpu.memory_space<vmem>>, vector<1x32x64xf32>
    %2 = vector.shape_cast %1 : vector<1x32x64xf32> to vector<32x64xf32>
    %cst = arith.constant dense<0.000000e+00> : vector<32x4xf32>
    %3 = tpu.matmul %2, %0, %cst {dimension_numbers = #tpu.dot_dimension_numbers<[1], [0], [0], [1], [0, 0, 1, 1], [], []>} : vector<32x64xf32>, vector<64x4xf32>, vector<32x4xf32> -> vector<32x4xf32>
    %c0_4 = arith.constant 0 : index
    %c0_5 = arith.constant 0 : index
    %c0_6 = arith.constant 0 : index
    %4 = vector.load %arg3[%c0_4, %c0_5, %c0_6] : memref<3x4x32xf32, #tpu.memory_space<vmem>>, vector<1x4x32xf32>
    %5 = vector.shape_cast %4 : vector<1x4x32xf32> to vector<4x32xf32>
    %cst_7 = arith.constant dense<0.000000e+00> : vector<32x32xf32>
    %6 = tpu.matmul %3, %5, %cst_7 {dimension_numbers = #tpu.dot_dimension_numbers<[1], [0], [0], [1], [0, 0, 1, 1], [], []>} : vector<32x4xf32>, vector<4x32xf32>, vector<32x32xf32> -> vector<32x32xf32>
    %c1 = arith.constant 1 : index
    %c0_8 = arith.constant 0 : index
    %c0_9 = arith.constant 0 : index
    %7 = vector.load %arg2[%c1, %c0_8, %c0_9] : memref<3x32x64xf32, #tpu.memory_space<vmem>>, vector<1x32x64xf32>
    %8 = vector.shape_cast %7 : vector<1x32x64xf32> to vector<32x64xf32>
    %cst_10 = arith.constant dense<0.000000e+00> : vector<32x4xf32>
    %9 = tpu.matmul %8, %0, %cst_10 {dimension_numbers = #tpu.dot_dimension_numbers<[1], [0], [0], [1], [0, 0, 1, 1], [], []>} : vector<32x64xf32>, vector<64x4xf32>, vector<32x4xf32> -> vector<32x4xf32>
    %c1_11 = arith.constant 1 : index
    %c0_12 = arith.constant 0 : index
    %c0_13 = arith.constant 0 : index
    %10 = vector.load %arg3[%c1_11, %c0_12, %c0_13] : memref<3x4x32xf32, #tpu.memory_space<vmem>>, vector<1x4x32xf32>
    %11 = vector.shape_cast %10 : vector<1x4x32xf32> to vector<4x32xf32>
    %cst_14 = arith.constant dense<0.000000e+00> : vector<32x32xf32>
    %12 = tpu.matmul %9, %11, %cst_14 {dimension_numbers = #tpu.dot_dimension_numbers<[1], [0], [0], [1], [0, 0, 1, 1], [], []>} : vector<32x4xf32>, vector<4x32xf32>, vector<32x32xf32> -> vector<32x32xf32>
    %13 = arith.addf %6, %12 : vector<32x32xf32>
    %c2 = arith.constant 2 : index
    %c0_15 = arith.constant 0 : index
    %c0_16 = arith.constant 0 : index
    %14 = vector.load %arg2[%c2, %c0_15, %c0_16] : memref<3x32x64xf32, #tpu.memory_space<vmem>>, vector<1x32x64xf32>
    %15 = vector.shape_cast %14 : vector<1x32x64xf32> to vector<32x64xf32>
    %cst_17 = arith.constant dense<0.000000e+00> : vector<32x4xf32>
    %16 = tpu.matmul %15, %0, %cst_17 {dimension_numbers = #tpu.dot_dimension_numbers<[1], [0], [0], [1], [0, 0, 1, 1], [], []>} : vector<32x64xf32>, vector<64x4xf32>, vector<32x4xf32> -> vector<32x4xf32>
    %c2_18 = arith.constant 2 : index
    %c0_19 = arith.constant 0 : index
    %c0_20 = arith.constant 0 : index
    %17 = vector.load %arg3[%c2_18, %c0_19, %c0_20] : memref<3x4x32xf32, #tpu.memory_space<vmem>>, vector<1x4x32xf32>
    %18 = vector.shape_cast %17 : vector<1x4x32xf32> to vector<4x32xf32>
    %cst_21 = arith.constant dense<0.000000e+00> : vector<32x32xf32>
    %19 = tpu.matmul %16, %18, %cst_21 {dimension_numbers = #tpu.dot_dimension_numbers<[1], [0], [0], [1], [0, 0, 1, 1], [], []>} : vector<32x4xf32>, vector<4x32xf32>, vector<32x32xf32> -> vector<32x32xf32>
    %20 = arith.addf %13, %19 : vector<32x32xf32>
    %c0_22 = arith.constant 0 : index
    %c0_23 = arith.constant 0 : index
    %21 = vector.load %arg4[%c0_22, %c0_23] : memref<1x32xf32, #tpu.memory_space<vmem>>, vector<1x32xf32>
    %22 = vector.broadcast %21 : vector<1x32xf32> to vector<32x32xf32>
    %23 = arith.addf %20, %22 : vector<32x32xf32>
    %cst_24 = arith.constant 0.000000e+00 : f32
    %24 = vector.broadcast %cst_24 : f32 to vector<32x32xf32>
    %25 = arith.maximumf %23, %24 : vector<32x32xf32>
    %c0_25 = arith.constant 0 : index
    %c0_26 = arith.constant 0 : index
    %c0_27 = arith.constant 0 : index
    %26 = vector.load %arg5[%c0_25, %c0_26, %c0_27] : memref<3x16x32xf32, #tpu.memory_space<vmem>>, vector<1x16x32xf32>
    %27 = vector.shape_cast %26 : vector<1x16x32xf32> to vector<16x32xf32>
    %cst_28 = arith.constant dense<0.000000e+00> : vector<16x32xf32>
    %28 = tpu.matmul %27, %25, %cst_28 {dimension_numbers = #tpu.dot_dimension_numbers<[1], [0], [0], [1], [0, 0, 1, 1], [], []>} : vector<16x32xf32>, vector<32x32xf32>, vector<16x32xf32> -> vector<16x32xf32>
    %c0_29 = arith.constant 0 : index
    %c0_30 = arith.constant 0 : index
    %c0_31 = arith.constant 0 : index
    %29 = vector.load %arg6[%c0_29, %c0_30, %c0_31] : memref<3x32x32xf32, #tpu.memory_space<vmem>>, vector<1x32x32xf32>
    %30 = vector.shape_cast %29 : vector<1x32x32xf32> to vector<32x32xf32>
    %cst_32 = arith.constant dense<0.000000e+00> : vector<16x32xf32>
    %31 = tpu.matmul %28, %30, %cst_32 {dimension_numbers = #tpu.dot_dimension_numbers<[1], [0], [0], [1], [0, 0, 1, 1], [], []>} : vector<16x32xf32>, vector<32x32xf32>, vector<16x32xf32> -> vector<16x32xf32>
    %c1_33 = arith.constant 1 : index
    %c0_34 = arith.constant 0 : index
    %c0_35 = arith.constant 0 : index
    %32 = vector.load %arg5[%c1_33, %c0_34, %c0_35] : memref<3x16x32xf32, #tpu.memory_space<vmem>>, vector<1x16x32xf32>
    %33 = vector.shape_cast %32 : vector<1x16x32xf32> to vector<16x32xf32>
    %cst_36 = arith.constant dense<0.000000e+00> : vector<16x32xf32>
    %34 = tpu.matmul %33, %25, %cst_36 {dimension_numbers = #tpu.dot_dimension_numbers<[1], [0], [0], [1], [0, 0, 1, 1], [], []>} : vector<16x32xf32>, vector<32x32xf32>, vector<16x32xf32> -> vector<16x32xf32>
    %c1_37 = arith.constant 1 : index
    %c0_38 = arith.constant 0 : index
    %c0_39 = arith.constant 0 : index
    %35 = vector.load %arg6[%c1_37, %c0_38, %c0_39] : memref<3x32x32xf32, #tpu.memory_space<vmem>>, vector<1x32x32xf32>
    %36 = vector.shape_cast %35 : vector<1x32x32xf32> to vector<32x32xf32>
    %cst_40 = arith.constant dense<0.000000e+00> : vector<16x32xf32>
    %37 = tpu.matmul %34, %36, %cst_40 {dimension_numbers = #tpu.dot_dimension_numbers<[1], [0], [0], [1], [0, 0, 1, 1], [], []>} : vector<16x32xf32>, vector<32x32xf32>, vector<16x32xf32> -> vector<16x32xf32>
    %38 = arith.addf %31, %37 : vector<16x32xf32>
    %c2_41 = arith.constant 2 : index
    %c0_42 = arith.constant 0 : index
    %c0_43 = arith.constant 0 : index
    %39 = vector.load %arg5[%c2_41, %c0_42, %c0_43] : memref<3x16x32xf32, #tpu.memory_space<vmem>>, vector<1x16x32xf32>
    %40 = vector.shape_cast %39 : vector<1x16x32xf32> to vector<16x32xf32>
    %cst_44 = arith.constant dense<0.000000e+00> : vector<16x32xf32>
    %41 = tpu.matmul %40, %25, %cst_44 {dimension_numbers = #tpu.dot_dimension_numbers<[1], [0], [0], [1], [0, 0, 1, 1], [], []>} : vector<16x32xf32>, vector<32x32xf32>, vector<16x32xf32> -> vector<16x32xf32>
    %c2_45 = arith.constant 2 : index
    %c0_46 = arith.constant 0 : index
    %c0_47 = arith.constant 0 : index
    %42 = vector.load %arg6[%c2_45, %c0_46, %c0_47] : memref<3x32x32xf32, #tpu.memory_space<vmem>>, vector<1x32x32xf32>
    %43 = vector.shape_cast %42 : vector<1x32x32xf32> to vector<32x32xf32>
    %cst_48 = arith.constant dense<0.000000e+00> : vector<16x32xf32>
    %44 = tpu.matmul %41, %43, %cst_48 {dimension_numbers = #tpu.dot_dimension_numbers<[1], [0], [0], [1], [0, 0, 1, 1], [], []>} : vector<16x32xf32>, vector<32x32xf32>, vector<16x32xf32> -> vector<16x32xf32>
    %45 = arith.addf %38, %44 : vector<16x32xf32>
    %c0_49 = arith.constant 0 : index
    %c0_50 = arith.constant 0 : index
    %46 = vector.load %arg7[%c0_49, %c0_50] : memref<1x32xf32, #tpu.memory_space<vmem>>, vector<1x32xf32>
    %47 = vector.broadcast %46 : vector<1x32xf32> to vector<16x32xf32>
    %48 = arith.addf %45, %47 : vector<16x32xf32>
    %cst_51 = arith.constant 0.000000e+00 : f32
    %49 = vector.broadcast %cst_51 : f32 to vector<16x32xf32>
    %50 = arith.maximumf %48, %49 : vector<16x32xf32>
    %c0_52 = arith.constant 0 : index
    %c0_53 = arith.constant 0 : index
    %c0_54 = arith.constant 0 : index
    %51 = vector.load %arg8[%c0_52, %c0_53, %c0_54] : memref<3x8x16xf32, #tpu.memory_space<vmem>>, vector<1x8x16xf32>
    %52 = vector.shape_cast %51 : vector<1x8x16xf32> to vector<8x16xf32>
    %cst_55 = arith.constant dense<0.000000e+00> : vector<8x32xf32>
    %53 = tpu.matmul %52, %50, %cst_55 {dimension_numbers = #tpu.dot_dimension_numbers<[1], [0], [0], [1], [0, 0, 1, 1], [], []>} : vector<8x16xf32>, vector<16x32xf32>, vector<8x32xf32> -> vector<8x32xf32>
    %c0_56 = arith.constant 0 : index
    %c0_57 = arith.constant 0 : index
    %c0_58 = arith.constant 0 : index
    %54 = vector.load %arg9[%c0_56, %c0_57, %c0_58] : memref<3x32x32xf32, #tpu.memory_space<vmem>>, vector<1x32x32xf32>
    %55 = vector.shape_cast %54 : vector<1x32x32xf32> to vector<32x32xf32>
    %cst_59 = arith.constant dense<0.000000e+00> : vector<8x32xf32>
    %56 = tpu.matmul %53, %55, %cst_59 {dimension_numbers = #tpu.dot_dimension_numbers<[1], [0], [0], [1], [0, 0, 1, 1], [], []>} : vector<8x32xf32>, vector<32x32xf32>, vector<8x32xf32> -> vector<8x32xf32>
    %c1_60 = arith.constant 1 : index
    %c0_61 = arith.constant 0 : index
    %c0_62 = arith.constant 0 : index
    %57 = vector.load %arg8[%c1_60, %c0_61, %c0_62] : memref<3x8x16xf32, #tpu.memory_space<vmem>>, vector<1x8x16xf32>
    %58 = vector.shape_cast %57 : vector<1x8x16xf32> to vector<8x16xf32>
    %cst_63 = arith.constant dense<0.000000e+00> : vector<8x32xf32>
    %59 = tpu.matmul %58, %50, %cst_63 {dimension_numbers = #tpu.dot_dimension_numbers<[1], [0], [0], [1], [0, 0, 1, 1], [], []>} : vector<8x16xf32>, vector<16x32xf32>, vector<8x32xf32> -> vector<8x32xf32>
    %c1_64 = arith.constant 1 : index
    %c0_65 = arith.constant 0 : index
    %c0_66 = arith.constant 0 : index
    %60 = vector.load %arg9[%c1_64, %c0_65, %c0_66] : memref<3x32x32xf32, #tpu.memory_space<vmem>>, vector<1x32x32xf32>
    %61 = vector.shape_cast %60 : vector<1x32x32xf32> to vector<32x32xf32>
    %cst_67 = arith.constant dense<0.000000e+00> : vector<8x32xf32>
    %62 = tpu.matmul %59, %61, %cst_67 {dimension_numbers = #tpu.dot_dimension_numbers<[1], [0], [0], [1], [0, 0, 1, 1], [], []>} : vector<8x32xf32>, vector<32x32xf32>, vector<8x32xf32> -> vector<8x32xf32>
    %63 = arith.addf %56, %62 : vector<8x32xf32>
    %c2_68 = arith.constant 2 : index
    %c0_69 = arith.constant 0 : index
    %c0_70 = arith.constant 0 : index
    %64 = vector.load %arg8[%c2_68, %c0_69, %c0_70] : memref<3x8x16xf32, #tpu.memory_space<vmem>>, vector<1x8x16xf32>
    %65 = vector.shape_cast %64 : vector<1x8x16xf32> to vector<8x16xf32>
    %cst_71 = arith.constant dense<0.000000e+00> : vector<8x32xf32>
    %66 = tpu.matmul %65, %50, %cst_71 {dimension_numbers = #tpu.dot_dimension_numbers<[1], [0], [0], [1], [0, 0, 1, 1], [], []>} : vector<8x16xf32>, vector<16x32xf32>, vector<8x32xf32> -> vector<8x32xf32>
    %c2_72 = arith.constant 2 : index
    %c0_73 = arith.constant 0 : index
    %c0_74 = arith.constant 0 : index
    %67 = vector.load %arg9[%c2_72, %c0_73, %c0_74] : memref<3x32x32xf32, #tpu.memory_space<vmem>>, vector<1x32x32xf32>
    %68 = vector.shape_cast %67 : vector<1x32x32xf32> to vector<32x32xf32>
    %cst_75 = arith.constant dense<0.000000e+00> : vector<8x32xf32>
    %69 = tpu.matmul %66, %68, %cst_75 {dimension_numbers = #tpu.dot_dimension_numbers<[1], [0], [0], [1], [0, 0, 1, 1], [], []>} : vector<8x32xf32>, vector<32x32xf32>, vector<8x32xf32> -> vector<8x32xf32>
    %70 = arith.addf %63, %69 : vector<8x32xf32>
    %c0_76 = arith.constant 0 : index
    %c0_77 = arith.constant 0 : index
    %71 = vector.load %arg10[%c0_76, %c0_77] : memref<1x32xf32, #tpu.memory_space<vmem>>, vector<1x32xf32>
    %72 = vector.broadcast %71 : vector<1x32xf32> to vector<8x32xf32>
    %73 = arith.addf %70, %72 : vector<8x32xf32>
    %cst_78 = arith.constant 0.000000e+00 : f32
    %74 = vector.broadcast %cst_78 : f32 to vector<8x32xf32>
    %75 = arith.maximumf %73, %74 : vector<8x32xf32>
    %c0_79 = arith.constant 0 : index
    %c0_80 = arith.constant 0 : index
    %c0_81 = arith.constant 0 : index
    %76 = vector.load %arg11[%c0_79, %c0_80, %c0_81] : memref<4x2x8xf32, #tpu.memory_space<vmem>>, vector<1x2x8xf32>
    %77 = vector.shape_cast %76 : vector<1x2x8xf32> to vector<2x8xf32>
    %cst_82 = arith.constant dense<0.000000e+00> : vector<2x32xf32>
    %78 = tpu.matmul %77, %75, %cst_82 {dimension_numbers = #tpu.dot_dimension_numbers<[1], [0], [0], [1], [0, 0, 1, 1], [], []>} : vector<2x8xf32>, vector<8x32xf32>, vector<2x32xf32> -> vector<2x32xf32>
    %c0_83 = arith.constant 0 : index
    %c0_84 = arith.constant 0 : index
    %c0_85 = arith.constant 0 : index
    %79 = vector.load %arg12[%c0_83, %c0_84, %c0_85] : memref<4x32x128xf32, #tpu.memory_space<vmem>>, vector<1x32x128xf32>
    %80 = vector.shape_cast %79 : vector<1x32x128xf32> to vector<32x128xf32>
    %cst_86 = arith.constant dense<0.000000e+00> : vector<2x128xf32>
    %81 = tpu.matmul %78, %80, %cst_86 {dimension_numbers = #tpu.dot_dimension_numbers<[1], [0], [0], [1], [0, 0, 1, 1], [], []>} : vector<2x32xf32>, vector<32x128xf32>, vector<2x128xf32> -> vector<2x128xf32>
    %c1_87 = arith.constant 1 : index
    %c0_88 = arith.constant 0 : index
    %c0_89 = arith.constant 0 : index
    %82 = vector.load %arg11[%c1_87, %c0_88, %c0_89] : memref<4x2x8xf32, #tpu.memory_space<vmem>>, vector<1x2x8xf32>
    %83 = vector.shape_cast %82 : vector<1x2x8xf32> to vector<2x8xf32>
    %cst_90 = arith.constant dense<0.000000e+00> : vector<2x32xf32>
    %84 = tpu.matmul %83, %75, %cst_90 {dimension_numbers = #tpu.dot_dimension_numbers<[1], [0], [0], [1], [0, 0, 1, 1], [], []>} : vector<2x8xf32>, vector<8x32xf32>, vector<2x32xf32> -> vector<2x32xf32>
    %c1_91 = arith.constant 1 : index
    %c0_92 = arith.constant 0 : index
    %c0_93 = arith.constant 0 : index
    %85 = vector.load %arg12[%c1_91, %c0_92, %c0_93] : memref<4x32x128xf32, #tpu.memory_space<vmem>>, vector<1x32x128xf32>
    %86 = vector.shape_cast %85 : vector<1x32x128xf32> to vector<32x128xf32>
    %cst_94 = arith.constant dense<0.000000e+00> : vector<2x128xf32>
    %87 = tpu.matmul %84, %86, %cst_94 {dimension_numbers = #tpu.dot_dimension_numbers<[1], [0], [0], [1], [0, 0, 1, 1], [], []>} : vector<2x32xf32>, vector<32x128xf32>, vector<2x128xf32> -> vector<2x128xf32>
    %88 = arith.addf %81, %87 : vector<2x128xf32>
    %c2_95 = arith.constant 2 : index
    %c0_96 = arith.constant 0 : index
    %c0_97 = arith.constant 0 : index
    %89 = vector.load %arg11[%c2_95, %c0_96, %c0_97] : memref<4x2x8xf32, #tpu.memory_space<vmem>>, vector<1x2x8xf32>
    %90 = vector.shape_cast %89 : vector<1x2x8xf32> to vector<2x8xf32>
    %cst_98 = arith.constant dense<0.000000e+00> : vector<2x32xf32>
    %91 = tpu.matmul %90, %75, %cst_98 {dimension_numbers = #tpu.dot_dimension_numbers<[1], [0], [0], [1], [0, 0, 1, 1], [], []>} : vector<2x8xf32>, vector<8x32xf32>, vector<2x32xf32> -> vector<2x32xf32>
    %c2_99 = arith.constant 2 : index
    %c0_100 = arith.constant 0 : index
    %c0_101 = arith.constant 0 : index
    %92 = vector.load %arg12[%c2_99, %c0_100, %c0_101] : memref<4x32x128xf32, #tpu.memory_space<vmem>>, vector<1x32x128xf32>
    %93 = vector.shape_cast %92 : vector<1x32x128xf32> to vector<32x128xf32>
    %cst_102 = arith.constant dense<0.000000e+00> : vector<2x128xf32>
    %94 = tpu.matmul %91, %93, %cst_102 {dimension_numbers = #tpu.dot_dimension_numbers<[1], [0], [0], [1], [0, 0, 1, 1], [], []>} : vector<2x32xf32>, vector<32x128xf32>, vector<2x128xf32> -> vector<2x128xf32>
    %95 = arith.addf %88, %94 : vector<2x128xf32>
    %c3 = arith.constant 3 : index
    %c0_103 = arith.constant 0 : index
    %c0_104 = arith.constant 0 : index
    %96 = vector.load %arg11[%c3, %c0_103, %c0_104] : memref<4x2x8xf32, #tpu.memory_space<vmem>>, vector<1x2x8xf32>
    %97 = vector.shape_cast %96 : vector<1x2x8xf32> to vector<2x8xf32>
    %cst_105 = arith.constant dense<0.000000e+00> : vector<2x32xf32>
    %98 = tpu.matmul %97, %75, %cst_105 {dimension_numbers = #tpu.dot_dimension_numbers<[1], [0], [0], [1], [0, 0, 1, 1], [], []>} : vector<2x8xf32>, vector<8x32xf32>, vector<2x32xf32> -> vector<2x32xf32>
    %c3_106 = arith.constant 3 : index
    %c0_107 = arith.constant 0 : index
    %c0_108 = arith.constant 0 : index
    %99 = vector.load %arg12[%c3_106, %c0_107, %c0_108] : memref<4x32x128xf32, #tpu.memory_space<vmem>>, vector<1x32x128xf32>
    %100 = vector.shape_cast %99 : vector<1x32x128xf32> to vector<32x128xf32>
    %cst_109 = arith.constant dense<0.000000e+00> : vector<2x128xf32>
    %101 = tpu.matmul %98, %100, %cst_109 {dimension_numbers = #tpu.dot_dimension_numbers<[1], [0], [0], [1], [0, 0, 1, 1], [], []>} : vector<2x32xf32>, vector<32x128xf32>, vector<2x128xf32> -> vector<2x128xf32>
    %102 = arith.addf %95, %101 : vector<2x128xf32>
    %c0_110 = arith.constant 0 : index
    %c0_111 = arith.constant 0 : index
    %103 = vector.load %arg13[%c0_110, %c0_111] : memref<1x128xf32, #tpu.memory_space<vmem>>, vector<1x128xf32>
    %104 = vector.broadcast %103 : vector<1x128xf32> to vector<2x128xf32>
    %105 = arith.addf %102, %104 : vector<2x128xf32>
    %cst_112 = arith.constant 0.000000e+00 : f32
    %106 = vector.broadcast %cst_112 : f32 to vector<2x128xf32>
    %107 = arith.maximumf %105, %106 : vector<2x128xf32>
    %c0_113 = arith.constant 0 : index
    %c0_114 = arith.constant 0 : index
    %108 = vector.load %arg14[%c0_113, %c0_114] : memref<128x128xf32, #tpu.memory_space<vmem>>, vector<128x128xf32>
    %cst_115 = arith.constant dense<0.000000e+00> : vector<2x128xf32>
    %109 = tpu.matmul %107, %108, %cst_115 {dimension_numbers = #tpu.dot_dimension_numbers<[1], [0], [0], [1], [0, 0, 1, 1], [], []>} : vector<2x128xf32>, vector<128x128xf32>, vector<2x128xf32> -> vector<2x128xf32>
    %c0_116 = arith.constant 0 : index
    %c0_117 = arith.constant 0 : index
    %110 = vector.load %arg15[%c0_116, %c0_117] : memref<1x128xf32, #tpu.memory_space<vmem>>, vector<1x128xf32>
    %111 = vector.broadcast %110 : vector<1x128xf32> to vector<2x128xf32>
    %112 = arith.addf %109, %111 : vector<2x128xf32>
    %c0_118 = arith.constant 0 : index
    %c0_119 = arith.constant 0 : index
    %113 = vector.load %arg16[%c0_118, %c0_119] : memref<2x128xf32, #tpu.memory_space<vmem>>, vector<2x128xf32>
    tpu.vector_store %arg16[%c0_118, %c0_119], %112 {strides = array<i32>} : memref<2x128xf32, #tpu.memory_space<vmem>>, vector<2x128xf32>,
    return
  }
  func.func @transform_0(%arg0: i32) -> (i32, i32) {
    %c0_i32 = arith.constant 0 : i32
    %c0_i32_0 = arith.constant 0 : i32
    %c0_i32_1 = arith.constant 0 : i32
    return %c0_i32, %c0_i32_0 : i32, i32
  }
  func.func @transform_1(%arg0: i32) -> (i32, i32, i32) {
    %c0_i32 = arith.constant 0 : i32
    %c0_i32_0 = arith.constant 0 : i32
    %c0_i32_1 = arith.constant 0 : i32
    %c0_i32_2 = arith.constant 0 : i32
    return %c0_i32, %c0_i32_0, %c0_i32_1 : i32, i32, i32
  }
  func.func @transform_2(%arg0: i32) -> (i32, i32, i32) {
    %c0_i32 = arith.constant 0 : i32
    %c0_i32_0 = arith.constant 0 : i32
    %c0_i32_1 = arith.constant 0 : i32
    %c0_i32_2 = arith.constant 0 : i32
    return %c0_i32, %c0_i32_0, %c0_i32_1 : i32, i32, i32
  }
  func.func @transform_3(%arg0: i32) -> (i32, i32) {
    %c0_i32 = arith.constant 0 : i32
    %c0_i32_0 = arith.constant 0 : i32
    %c0_i32_1 = arith.constant 0 : i32
    return %c0_i32, %c0_i32_0 : i32, i32
  }
  func.func @transform_4(%arg0: i32) -> (i32, i32, i32) {
    %c0_i32 = arith.constant 0 : i32
    %c0_i32_0 = arith.constant 0 : i32
    %c0_i32_1 = arith.constant 0 : i32
    %c0_i32_2 = arith.constant 0 : i32
    return %c0_i32, %c0_i32_0, %c0_i32_1 : i32, i32, i32
  }
  func.func @transform_5(%arg0: i32) -> (i32, i32, i32) {
    %c0_i32 = arith.constant 0 : i32
    %c0_i32_0 = arith.constant 0 : i32
    %c0_i32_1 = arith.constant 0 : i32
    %c0_i32_2 = arith.constant 0 : i32
    return %c0_i32, %c0_i32_0, %c0_i32_1 : i32, i32, i32
  }
  func.func @transform_6(%arg0: i32) -> (i32, i32) {
    %c0_i32 = arith.constant 0 : i32
    %c0_i32_0 = arith.constant 0 : i32
    %c0_i32_1 = arith.constant 0 : i32
    return %c0_i32, %c0_i32_0 : i32, i32
  }
  func.func @transform_7(%arg0: i32) -> (i32, i32, i32) {
    %c0_i32 = arith.constant 0 : i32
    %c0_i32_0 = arith.constant 0 : i32
    %c0_i32_1 = arith.constant 0 : i32
    %c0_i32_2 = arith.constant 0 : i32
    return %c0_i32, %c0_i32_0, %c0_i32_1 : i32, i32, i32
  }
  func.func @transform_8(%arg0: i32) -> (i32, i32, i32) {
    %c0_i32 = arith.constant 0 : i32
    %c0_i32_0 = arith.constant 0 : i32
    %c0_i32_1 = arith.constant 0 : i32
    %c0_i32_2 = arith.constant 0 : i32
    return %c0_i32, %c0_i32_0, %c0_i32_1 : i32, i32, i32
  }
  func.func @transform_9(%arg0: i32) -> (i32, i32) {
    %c0_i32 = arith.constant 0 : i32
    %c0_i32_0 = arith.constant 0 : i32
    %c0_i32_1 = arith.constant 0 : i32
    return %c0_i32, %c0_i32_0 : i32, i32
  }
  func.func @transform_10(%arg0: i32) -> (i32, i32, i32) {
    %c0_i32 = arith.constant 0 : i32
    %c0_i32_0 = arith.constant 0 : i32
    %c0_i32_1 = arith.constant 0 : i32
    %c0_i32_2 = arith.constant 0 : i32
    return %c0_i32, %c0_i32_0, %c0_i32_1 : i32, i32, i32
  }
  func.func @transform_11(%arg0: i32) -> (i32, i32, i32) {
    %c0_i32 = arith.constant 0 : i32
    %c0_i32_0 = arith.constant 0 : i32
    %c0_i32_1 = arith.constant 0 : i32
    %c0_i32_2 = arith.constant 0 : i32
    return %c0_i32, %c0_i32_0, %c0_i32_1 : i32, i32, i32
  }
  func.func @transform_12(%arg0: i32) -> (i32, i32) {
    %c0_i32 = arith.constant 0 : i32
    %c0_i32_0 = arith.constant 0 : i32
    %c0_i32_1 = arith.constant 0 : i32
    return %c0_i32, %c0_i32_0 : i32, i32
  }
  func.func @transform_13(%arg0: i32) -> (i32, i32) {
    %c0_i32 = arith.constant 0 : i32
    %c0_i32_0 = arith.constant 0 : i32
    %c0_i32_1 = arith.constant 0 : i32
    return %c0_i32, %c0_i32_0 : i32, i32
  }
  func.func @transform_14(%arg0: i32) -> (i32, i32) {
    %c0_i32 = arith.constant 0 : i32
    %c0_i32_0 = arith.constant 0 : i32
    %c0_i32_1 = arith.constant 0 : i32
    return %c0_i32, %c0_i32_0 : i32, i32
  }
  func.func @transform_15(%arg0: i32) -> (i32, i32) {
    %c0_i32 = arith.constant 0 : i32
    %c0_i32_0 = arith.constant 0 : i32
    %c0_i32_1 = arith.constant 0 : i32
    return %c0_i32, %c0_i32_0 : i32, i32
  }
}

</mosaic_0001>

<llo_original>
// kernel: model_forward.1
$region0: #{model_forward.1}
  #allocation0 [shape = 'u32[]', space=smem, size = 0x4, offset = 0x4, fixed_abs, tag = 'smem constant byte address 0x4 - core index']
  #allocation1 [shape = 'u32[144,128]{1,0:T(1,128)}', space=vmem, size = 0x12000, scoped, tag = 'internal scratch']
  %s0 = inlined_call_operand.vmem [shape: f32[64,4], index: 0, kind: input, shape index: {}]
  %s1 = inlined_call_operand.vmem [shape: f32[3,32,64], index: 1, kind: input, shape index: {}]
  %s2 = inlined_call_operand.vmem [shape: f32[3,4,32], index: 2, kind: input, shape index: {}]
  %s3 = inlined_call_operand.vmem [shape: f32[1,32], index: 3, kind: input, shape index: {}]
  %s4 = inlined_call_operand.vmem [shape: f32[3,16,32], index: 4, kind: input, shape index: {}]
  %s5 = inlined_call_operand.vmem [shape: f32[3,32,32], index: 5, kind: input, shape index: {}]
  %s6 = inlined_call_operand.vmem [shape: f32[1,32], index: 6, kind: input, shape index: {}]
  %s7 = inlined_call_operand.vmem [shape: f32[3,8,16], index: 7, kind: input, shape index: {}]
  %s8 = inlined_call_operand.vmem [shape: f32[3,32,32], index: 8, kind: input, shape index: {}]
  %s9 = inlined_call_operand.vmem [shape: f32[1,32], index: 9, kind: input, shape index: {}]
  %s10 = inlined_call_operand.vmem [shape: f32[4,2,8], index: 10, kind: input, shape index: {}]
  %s11 = inlined_call_operand.vmem [shape: f32[4,32,128], index: 11, kind: input, shape index: {}]
  %s12 = inlined_call_operand.vmem [shape: f32[1,128], index: 12, kind: input, shape index: {}]
  %s13 = inlined_call_operand.vmem [shape: f32[128,128], index: 13, kind: input, shape index: {}]
  %s14 = inlined_call_operand.vmem [shape: f32[1,128], index: 14, kind: input, shape index: {}]
  %s15 = inlined_call_operand.hbm [shape: f32[2,128], index: 15, kind: output, shape index: {}]
  %s16 = sld [smem:[#allocation0]]
  $region70: #{model_forward.1} parent=0
    _
  %s18 = ssub.s32 1, %s16
  %s19 = scalar_select 0, %s18, %s16
  $region1: #{model_forward.1} parent=0
    #allocation2 [shape = 'u8[1024]{0}', space=vmem, size = 0x400, scoped, tag = 'output window, operand 0, single buffered']
    #allocation3 [shape = 's32[1]{0}', space=sflag, size = 0x4, scoped, tag = 'scoped memory for model_forward.1']
    %20 = vsyncpa [#allocation3], 0
    // Predicated region
    $region2: #{model_forward.1} parent=1 // pred_check
      _
    $region3: #{model_forward.1} parent=1 // pred_check_branch
      %22 = sbr.rel (0) target = $region5
    $region4: #{model_forward.1} parent=1 // pred_region
      _
    $region5: #{model_forward.1} parent=1 // pred_fallthru
      _
    // Predicated region
    $region6: #{model_forward.1} parent=1 // pred_check
      _
    $region7: #{model_forward.1} parent=1 // pred_check_branch
      %24 = sbr.rel (0) target = $region9
    $region8: #{model_forward.1} parent=1 // pred_region
      _
    $region9: #{model_forward.1} parent=1 // pred_fallthru
      _
    // Predicated region
    $region10: #{model_forward.1} parent=1 // pred_check
      _
    $region11: #{model_forward.1} parent=1 // pred_check_branch
      %26 = sbr.rel (0) target = $region13
    $region12: #{model_forward.1} parent=1 // pred_region
      _
    $region13: #{model_forward.1} parent=1 // pred_fallthru
      _
    // Predicated region
    $region14: #{model_forward.1} parent=1 // pred_check
      _
    $region15: #{model_forward.1} parent=1 // pred_check_branch
      %28 = sbr.rel (0) target = $region17
    $region16: #{model_forward.1} parent=1 // pred_region
      _
    $region17: #{model_forward.1} parent=1 // pred_fallthru
      _
    // Predicated region
    $region18: #{model_forward.1} parent=1 // pred_check
      _
    $region19: #{model_forward.1} parent=1 // pred_check_branch
      %30 = sbr.rel (0) target = $region21
    $region20: #{model_forward.1} parent=1 // pred_region
      _
    $region21: #{model_forward.1} parent=1 // pred_fallthru
      _
    // Predicated region
    $region22: #{model_forward.1} parent=1 // pred_check
      _
    $region23: #{model_forward.1} parent=1 // pred_check_branch
      %32 = sbr.rel (0) target = $region25
    $region24: #{model_forward.1} parent=1 // pred_region
      _
    $region25: #{model_forward.1} parent=1 // pred_fallthru
      _
    // Predicated region
    $region26: #{model_forward.1} parent=1 // pred_check
      _
    $region27: #{model_forward.1} parent=1 // pred_check_branch
      %34 = sbr.rel (0) target = $region29
    $region28: #{model_forward.1} parent=1 // pred_region
      _
    $region29: #{model_forward.1} parent=1 // pred_fallthru
      _
    // Predicated region
    $region30: #{model_forward.1} parent=1 // pred_check
      _
    $region31: #{model_forward.1} parent=1 // pred_check_branch
      %36 = sbr.rel (0) target = $region33
    $region32: #{model_forward.1} parent=1 // pred_region
      _
    $region33: #{model_forward.1} parent=1 // pred_fallthru
      _
    // Predicated region
    $region34: #{model_forward.1} parent=1 // pred_check
      _
    $region35: #{model_forward.1} parent=1 // pred_check_branch
      %38 = sbr.rel (0) target = $region37
    $region36: #{model_forward.1} parent=1 // pred_region
      _
    $region37: #{model_forward.1} parent=1 // pred_fallthru
      _
    // Predicated region
    $region38: #{model_forward.1} parent=1 // pred_check
      _
    $region39: #{model_forward.1} parent=1 // pred_check_branch
      %40 = sbr.rel (0) target = $region41
    $region40: #{model_forward.1} parent=1 // pred_region
      _
    $region41: #{model_forward.1} parent=1 // pred_fallthru
      _
    // Predicated region
    $region42: #{model_forward.1} parent=1 // pred_check
      _
    $region43: #{model_forward.1} parent=1 // pred_check_branch
      %42 = sbr.rel (0) target = $region45
    $region44: #{model_forward.1} parent=1 // pred_region
      _
    $region45: #{model_forward.1} parent=1 // pred_fallthru
      _
    // Predicated region
    $region46: #{model_forward.1} parent=1 // pred_check
      _
    $region47: #{model_forward.1} parent=1 // pred_check_branch
      %44 = sbr.rel (0) target = $region49
    $region48: #{model_forward.1} parent=1 // pred_region
      _
    $region49: #{model_forward.1} parent=1 // pred_fallthru
      _
    // Predicated region
    $region50: #{model_forward.1} parent=1 // pred_check
      _
    $region51: #{model_forward.1} parent=1 // pred_check_branch
      %46 = sbr.rel (0) target = $region53
    $region52: #{model_forward.1} parent=1 // pred_region
      _
    $region53: #{model_forward.1} parent=1 // pred_fallthru
      _
    // Predicated region
    $region54: #{model_forward.1} parent=1 // pred_check
      _
    $region55: #{model_forward.1} parent=1 // pred_check_branch
      %48 = sbr.rel (0) target = $region57
    $region56: #{model_forward.1} parent=1 // pred_region
      _
    $region57: #{model_forward.1} parent=1 // pred_fallthru
      _
    // Predicated region
    $region58: #{model_forward.1} parent=1 // pred_check
      _
    $region59: #{model_forward.1} parent=1 // pred_check_branch
      %50 = sbr.rel (0) target = $region61
    $region60: #{model_forward.1} parent=1 // pred_region
      _
    $region61: #{model_forward.1} parent=1 // pred_fallthru
      _
    %v51 = vld [vmem:[%s0] sm:$0xff]
    %v52 = vld [vmem:[%s0 + $0x8] sm:$0xff]
    %v53 = vld [vmem:[%s0 + $0x10] sm:$0xff]
    %v54 = vld [vmem:[%s0 + $0x18] sm:$0xff]
    %v55 = vld [vmem:[%s0 + $0x20] sm:$0xff]
    %v56 = vld [vmem:[%s0 + $0x28] sm:$0xff]
    %v57 = vld [vmem:[%s0 + $0x30] sm:$0xff]
    %v58 = vld [vmem:[%s0 + $0x38] sm:$0xff]
    %v59 = vld [vmem:[%s1] sm:$0xff]
    %v60 = vld [vmem:[%s1 + $0x8] sm:$0xff]
    %v61 = vld [vmem:[%s1 + $0x10] sm:$0xff]
    %v62 = vld [vmem:[%s1 + $0x18] sm:$0xff]
    %vm63 = vcmask 523264
    %v65 = vsel %vm63, %v59, 0
    %v68 = vsel %vm63, %v60, 0
    %v71 = vsel %vm63, %v61, 0
    %v74 = vsel %vm63, %v62, 0
    %76 = vmatprep.subr.mxu0 0.0
    %77 = vmatpush1.msra.mxu0 %v51
    %78 = vmatprep.subr.mxu0 0.0
    %79 = vmatpush1.msra.mxu0 %v52
    %80 = vmatprep.subr.mxu0 0.0
    %81 = vmatpush1.msra.mxu0 %v53
    %82 = vmatprep.subr.mxu0 0.0
    %83 = vmatpush1.msra.mxu0 %v54
    %84 = vmatprep.subr.mxu0 0.0
    %85 = vmatpush1.msra.mxu0 %v55
    %86 = vmatprep.subr.mxu0 0.0
    %87 = vmatpush1.msra.mxu0 %v56
    %88 = vmatprep.subr.mxu0 0.0
    %89 = vmatpush1.msra.mxu0 %v57
    %90 = vmatprep.subr.mxu0 0.0
    %91 = vmatpush1.msra.mxu0 %v58
    %92 = vmatprep.subr.mxu0 0.0
    %93 = vmatpush1.msra.mxu0 0.0
    %94 = vmatprep.subr.mxu0 0.0
    %95 = vmatpush1.msra.mxu0 0.0
    %96 = vmatprep.subr.mxu0 0.0
    %97 = vmatpush1.msra.mxu0 0.0
    %98 = vmatprep.subr.mxu0 0.0
    %99 = vmatpush1.msra.mxu0 0.0
    %100 = vmatprep.subr.mxu0 0.0
    %101 = vmatpush1.msra.mxu0 0.0
    %102 = vmatprep.subr.mxu0 0.0
    %103 = vmatpush1.msra.mxu0 0.0
    %104 = vmatprep.subr.mxu0 0.0
    %105 = vmatpush1.msra.mxu0 0.0
    %106 = vmatprep.subr.mxu0 0.0
    %107 = vmatpush1.msra.mxu0 0.0
    %108 = vmatprep.subr.mxu0 0.0
    %109 = vmatpush1.msra.mxu0 0.0
    %110 = vmatprep.subr.mxu0 0.0
    %111 = vmatpush1.msra.mxu0 0.0
    %112 = vmatprep.subr.mxu0 0.0
    %113 = vmatpush1.msra.mxu0 0.0
    %114 = vmatprep.subr.mxu0 0.0
    %115 = vmatpush1.msra.mxu0 0.0
    %116 = vmatprep.subr.mxu0 0.0
    %117 = vmatpush1.msra.mxu0 0.0
    %118 = vmatprep.subr.mxu0 0.0
    %119 = vmatpush1.msra.mxu0 0.0
    %120 = vmatprep.subr.mxu0 0.0
    %121 = vmatpush1.msra.mxu0 0.0
    %122 = vmatprep.subr.mxu0 0.0
    %123 = vmatpush1.msra.mxu0 0.0
    %124 = vmatprep.subr.mxu0 0.0
    %125 = vmatpush1.msra.mxu0 0.0
    %126 = vmatprep.subr.mxu0 0.0
    %127 = vmatpush1.msra.mxu0 0.0
    %128 = vmatprep.subr.mxu0 0.0
    %129 = vmatpush1.msra.mxu0 0.0
    %130 = vmatprep.subr.mxu0 0.0
    %131 = vmatpush1.msra.mxu0 0.0
    %132 = vmatprep.subr.mxu0 0.0
    %133 = vmatpush1.msra.mxu0 0.0
    %134 = vmatprep.subr.mxu0 0.0
    %135 = vmatpush1.msra.mxu0 0.0
    %136 = vmatprep.subr.mxu0 0.0
    %137 = vmatpush1.msra.mxu0 0.0
    %138 = vmatprep.subr.mxu0 0.0
    %139 = vmatpush1.msra.mxu0 0.0
    %140 = vmatprep.mubr.f32.mxu0 0.0
    %141 = vmatmul.mubr.f32.gmra.mrb[0].mxu0 %v65
    %v142 = vpop.f32.mrb[0].mxu0
    %v143 = vadd.f32 0.0, %v142
    %v144 = vpop.f32.mrb[0].mxu0
    %145 = vmatprep.mubr.f32.mxu0 0.0
    %146 = vmatmul.mubr.f32.gmra.mrb[0].mxu0 %v68
    %v147 = vpop.f32.mrb[0].mxu0
    %v148 = vadd.f32 0.0, %v147
    %v149 = vpop.f32.mrb[0].mxu0
    %150 = vmatprep.mubr.f32.mxu0 0.0
    %151 = vmatmul.mubr.f32.gmra.mrb[0].mxu0 %v71
    %v152 = vpop.f32.mrb[0].mxu0
    %v153 = vadd.f32 0.0, %v152
    %v154 = vpop.f32.mrb[0].mxu0
    %155 = vmatprep.mubr.f32.mxu0 0.0
    %156 = vmatmul.mubr.f32.gmra.mrb[0].mxu0 %v74
    %v157 = vpop.f32.mrb[0].mxu0
    %v158 = vadd.f32 0.0, %v157
    %v159 = vpop.f32.mrb[0].mxu0
    %160 = vdwg.mxu0
    %v161 = vld [vmem:[%s2] sm:$0xf]
    %s162 = scalar_lea.vmem %s1, 32
    %v163 = vld [vmem:[%s162] sm:$0xff]
    %v164 = vld [vmem:[%s162 + $0x8] sm:$0xff]
    %v165 = vld [vmem:[%s162 + $0x10] sm:$0xff]
    %v166 = vld [vmem:[%s162 + $0x18] sm:$0xff]
    %v168 = vsel %vm63, %v163, 0
    %v171 = vsel %vm63, %v164, 0
    %v174 = vsel %vm63, %v165, 0
    %v177 = vsel %vm63, %v166, 0
    %179 = vmatprep.subr.mxu0 0.0
    %180 = vmatpush1.msra.mxu0 %v51
    %181 = vmatprep.subr.mxu0 0.0
    %182 = vmatpush1.msra.mxu0 %v52
    %183 = vmatprep.subr.mxu0 0.0
    %184 = vmatpush1.msra.mxu0 %v53
    %185 = vmatprep.subr.mxu0 0.0
    %186 = vmatpush1.msra.mxu0 %v54
    %187 = vmatprep.subr.mxu0 0.0
    %188 = vmatpush1.msra.mxu0 %v55
    %189 = vmatprep.subr.mxu0 0.0
    %190 = vmatpush1.msra.mxu0 %v56
    %191 = vmatprep.subr.mxu0 0.0
    %192 = vmatpush1.msra.mxu0 %v57
    %193 = vmatprep.subr.mxu0 0.0
    %194 = vmatpush1.msra.mxu0 %v58
    %195 = vmatprep.subr.mxu0 0.0
    %196 = vmatpush1.msra.mxu0 0.0
    %197 = vmatprep.subr.mxu0 0.0
    %198 = vmatpush1.msra.mxu0 0.0
    %199 = vmatprep.subr.mxu0 0.0
    %200 = vmatpush1.msra.mxu0 0.0
    %201 = vmatprep.subr.mxu0 0.0
    %202 = vmatpush1.msra.mxu0 0.0
    %203 = vmatprep.subr.mxu0 0.0
    %204 = vmatpush1.msra.mxu0 0.0
    %205 = vmatprep.subr.mxu0 0.0
    %206 = vmatpush1.msra.mxu0 0.0
    %207 = vmatprep.subr.mxu0 0.0
    %208 = vmatpush1.msra.mxu0 0.0
    %209 = vmatprep.subr.mxu0 0.0
    %210 = vmatpush1.msra.mxu0 0.0
    %211 = vmatprep.subr.mxu0 0.0
    %212 = vmatpush1.msra.mxu0 0.0
    %213 = vmatprep.subr.mxu0 0.0
    %214 = vmatpush1.msra.mxu0 0.0
    %215 = vmatprep.subr.mxu0 0.0
    %216 = vmatpush1.msra.mxu0 0.0
    %217 = vmatprep.subr.mxu0 0.0
    %218 = vmatpush1.msra.mxu0 0.0
    %219 = vmatprep.subr.mxu0 0.0
    %220 = vmatpush1.msra.mxu0 0.0
    %221 = vmatprep.subr.mxu0 0.0
    %222 = vmatpush1.msra.mxu0 0.0
    %223 = vmatprep.subr.mxu0 0.0
    %224 = vmatpush1.msra.mxu0 0.0
    %225 = vmatprep.subr.mxu0 0.0
    %226 = vmatpush1.msra.mxu0 0.0
    %227 = vmatprep.subr.mxu0 0.0
    %228 = vmatpush1.msra.mxu0 0.0
    %229 = vmatprep.subr.mxu0 0.0
    %230 = vmatpush1.msra.mxu0 0.0
    %231 = vmatprep.subr.mxu0 0.0
    %232 = vmatpush1.msra.mxu0 0.0
    %233 = vmatprep.subr.mxu0 0.0
    %234 = vmatpush1.msra.mxu0 0.0
    %235 = vmatprep.subr.mxu0 0.0
    %236 = vmatpush1.msra.mxu0 0.0
    %237 = vmatprep.subr.mxu0 0.0
    %238 = vmatpush1.msra.mxu0 0.0
    %239 = vmatprep.subr.mxu0 0.0
    %240 = vmatpush1.msra.mxu0 0.0
    %241 = vmatprep.subr.mxu0 0.0
    %242 = vmatpush1.msra.mxu0 0.0
    %243 = vmatprep.mubr.f32.mxu0 0.0
    %244 = vmatmul.mubr.f32.gmra.mrb[0].mxu0 %v168
    %v245 = vpop.f32.mrb[0].mxu0
    %v246 = vadd.f32 0.0, %v245
    %v247 = vpop.f32.mrb[0].mxu0
    %248 = vmatprep.mubr.f32.mxu0 0.0
    %249 = vmatmul.mubr.f32.gmra.mrb[0].mxu0 %v171
    %v250 = vpop.f32.mrb[0].mxu0
    %v251 = vadd.f32 0.0, %v250
    %v252 = vpop.f32.mrb[0].mxu0
    %253 = vmatprep.mubr.f32.mxu0 0.0
    %254 = vmatmul.mubr.f32.gmra.mrb[0].mxu0 %v174
    %v255 = vpop.f32.mrb[0].mxu0
    %v256 = vadd.f32 0.0, %v255
    %v257 = vpop.f32.mrb[0].mxu0
    %258 = vmatprep.mubr.f32.mxu0 0.0
    %259 = vmatmul.mubr.f32.gmra.mrb[0].mxu0 %v177
    %v260 = vpop.f32.mrb[0].mxu0
    %v261 = vadd.f32 0.0, %v260
    %v262 = vpop.f32.mrb[0].mxu0
    %263 = vdwg.mxu0
    %s264 = scalar_lea.vmem %s2, 4
    %v265 = vld [vmem:[%s264] sm:$0xf]
    %vm266 = vcmask 31744
    %v268 = vsel %vm266, %v246, 0
    %v271 = vsel %vm266, %v251, 0
    %v274 = vsel %vm266, %v256, 0
    %v277 = vsel %vm266, %v261, 0
    %vm279 = vcmask 1043456
    %v281 = vsel %vm279, %v265, 0
    %283 = vmatprep.subr.mxu0 0.0
    %284 = vmatpush1.msra.mxu0 %v281
    %285 = vmatprep.subr.mxu0 0.0
    %286 = vmatpush1.msra.mxu0 0.0
    %287 = vmatprep.subr.mxu0 0.0
    %288 = vmatpush1.msra.mxu0 0.0
    %289 = vmatprep.subr.mxu0 0.0
    %290 = vmatpush1.msra.mxu0 0.0
    %291 = vmatprep.subr.mxu0 0.0
    %292 = vmatpush1.msra.mxu0 0.0
    %293 = vmatprep.subr.mxu0 0.0
    %294 = vmatpush1.msra.mxu0 0.0
    %295 = vmatprep.subr.mxu0 0.0
    %296 = vmatpush1.msra.mxu0 0.0
    %297 = vmatprep.subr.mxu0 0.0
    %298 = vmatpush1.msra.mxu0 0.0
    %299 = vmatprep.subr.mxu0 0.0
    %300 = vmatpush1.msra.mxu0 0.0
    %301 = vmatprep.subr.mxu0 0.0
    %302 = vmatpush1.msra.mxu0 0.0
    %303 = vmatprep.subr.mxu0 0.0
    %304 = vmatpush1.msra.mxu0 0.0
    %305 = vmatprep.subr.mxu0 0.0
    %306 = vmatpush1.msra.mxu0 0.0
    %307 = vmatprep.subr.mxu0 0.0
    %308 = vmatpush1.msra.mxu0 0.0
    %309 = vmatprep.subr.mxu0 0.0
    %310 = vmatpush1.msra.mxu0 0.0
    %311 = vmatprep.subr.mxu0 0.0
    %312 = vmatpush1.msra.mxu0 0.0
    %313 = vmatprep.subr.mxu0 0.0
    %314 = vmatpush1.msra.mxu0 0.0
    %315 = vmatprep.subr.mxu0 0.0
    %316 = vmatpush1.msra.mxu0 0.0
    %317 = vmatprep.subr.mxu0 0.0
    %318 = vmatpush1.msra.mxu0 0.0
    %319 = vmatprep.subr.mxu0 0.0
    %320 = vmatpush1.msra.mxu0 0.0
    %321 = vmatprep.subr.mxu0 0.0
    %322 = vmatpush1.msra.mxu0 0.0
    %323 = vmatprep.subr.mxu0 0.0
    %324 = vmatpush1.msra.mxu0 0.0
    %325 = vmatprep.subr.mxu0 0.0
    %326 = vmatpush1.msra.mxu0 0.0
    %327 = vmatprep.subr.mxu0 0.0
    %328 = vmatpush1.msra.mxu0 0.0
    %329 = vmatprep.subr.mxu0 0.0
    %330 = vmatpush1.msra.mxu0 0.0
    %331 = vmatprep.subr.mxu0 0.0
    %332 = vmatpush1.msra.mxu0 0.0
    %333 = vmatprep.subr.mxu0 0.0
    %334 = vmatpush1.msra.mxu0 0.0
    %335 = vmatprep.subr.mxu0 0.0
    %336 = vmatpush1.msra.mxu0 0.0
    %337 = vmatprep.subr.mxu0 0.0
    %338 = vmatpush1.msra.mxu0 0.0
    %339 = vmatprep.subr.mxu0 0.0
    %340 = vmatpush1.msra.mxu0 0.0
    %341 = vmatprep.subr.mxu0 0.0
    %342 = vmatpush1.msra.mxu0 0.0
    %343 = vmatprep.subr.mxu0 0.0
    %344 = vmatpush1.msra.mxu0 0.0
    %345 = vmatprep.subr.mxu0 0.0
    %346 = vmatpush1.msra.mxu0 0.0
    %347 = vmatprep.mubr.f32.mxu0 0.0
    %348 = vmatmul.mubr.f32.gmra.mrb[0].mxu0 %v268
    %v349 = vpop.f32.mrb[0].mxu0
    %v350 = vadd.f32 0.0, %v349
    %v351 = vpop.f32.mrb[0].mxu0
    %352 = vmatprep.mubr.f32.mxu0 0.0
    %353 = vmatmul.mubr.f32.gmra.mrb[0].mxu0 %v271
    %v354 = vpop.f32.mrb[0].mxu0
    %v355 = vadd.f32 0.0, %v354
    %v356 = vpop.f32.mrb[0].mxu0
    %357 = vmatprep.mubr.f32.mxu0 0.0
    %358 = vmatmul.mubr.f32.gmra.mrb[0].mxu0 %v274
    %v359 = vpop.f32.mrb[0].mxu0
    %v360 = vadd.f32 0.0, %v359
    %v361 = vpop.f32.mrb[0].mxu0
    %362 = vmatprep.mubr.f32.mxu0 0.0
    %363 = vmatmul.mubr.f32.gmra.mrb[0].mxu0 %v277
    %v364 = vpop.f32.mrb[0].mxu0
    %v365 = vadd.f32 0.0, %v364
    %v366 = vpop.f32.mrb[0].mxu0
    %367 = vdwg.mxu0
    %v369 = vsel %vm266, %v143, 0
    %v372 = vsel %vm266, %v148, 0
    %v375 = vsel %vm266, %v153, 0
    %v378 = vsel %vm266, %v158, 0
    %v381 = vsel %vm279, %v161, 0
    %383 = vmatprep.subr.mxu0 0.0
    %384 = vmatpush1.msra.mxu0 %v381
    %385 = vmatprep.subr.mxu0 0.0
    %386 = vmatpush1.msra.mxu0 0.0
    %387 = vmatprep.subr.mxu0 0.0
    %388 = vmatpush1.msra.mxu0 0.0
    %389 = vmatprep.subr.mxu0 0.0
    %390 = vmatpush1.msra.mxu0 0.0
    %391 = vmatprep.subr.mxu0 0.0
    %392 = vmatpush1.msra.mxu0 0.0
    %393 = vmatprep.subr.mxu0 0.0
    %394 = vmatpush1.msra.mxu0 0.0
    %395 = vmatprep.subr.mxu0 0.0
    %396 = vmatpush1.msra.mxu0 0.0
    %397 = vmatprep.subr.mxu0 0.0
    %398 = vmatpush1.msra.mxu0 0.0
    %399 = vmatprep.subr.mxu0 0.0
    %400 = vmatpush1.msra.mxu0 0.0
    %401 = vmatprep.subr.mxu0 0.0
    %402 = vmatpush1.msra.mxu0 0.0
    %403 = vmatprep.subr.mxu0 0.0
    %404 = vmatpush1.msra.mxu0 0.0
    %405 = vmatprep.subr.mxu0 0.0
    %406 = vmatpush1.msra.mxu0 0.0
    %407 = vmatprep.subr.mxu0 0.0
    %408 = vmatpush1.msra.mxu0 0.0
    %409 = vmatprep.subr.mxu0 0.0
    %410 = vmatpush1.msra.mxu0 0.0
    %411 = vmatprep.subr.mxu0 0.0
    %412 = vmatpush1.msra.mxu0 0.0
    %413 = vmatprep.subr.mxu0 0.0
    %414 = vmatpush1.msra.mxu0 0.0
    %415 = vmatprep.subr.mxu0 0.0
    %416 = vmatpush1.msra.mxu0 0.0
    %417 = vmatprep.subr.mxu0 0.0
    %418 = vmatpush1.msra.mxu0 0.0
    %419 = vmatprep.subr.mxu0 0.0
    %420 = vmatpush1.msra.mxu0 0.0
    %421 = vmatprep.subr.mxu0 0.0
    %422 = vmatpush1.msra.mxu0 0.0
    %423 = vmatprep.subr.mxu0 0.0
    %424 = vmatpush1.msra.mxu0 0.0
    %425 = vmatprep.subr.mxu0 0.0
    %426 = vmatpush1.msra.mxu0 0.0
    %427 = vmatprep.subr.mxu0 0.0
    %428 = vmatpush1.msra.mxu0 0.0
    %429 = vmatprep.subr.mxu0 0.0
    %430 = vmatpush1.msra.mxu0 0.0
    %431 = vmatprep.subr.mxu0 0.0
    %432 = vmatpush1.msra.mxu0 0.0
    %433 = vmatprep.subr.mxu0 0.0
    %434 = vmatpush1.msra.mxu0 0.0
    %435 = vmatprep.subr.mxu0 0.0
    %436 = vmatpush1.msra.mxu0 0.0
    %437 = vmatprep.subr.mxu0 0.0
    %438 = vmatpush1.msra.mxu0 0.0
    %439 = vmatprep.subr.mxu0 0.0
    %440 = vmatpush1.msra.mxu0 0.0
    %441 = vmatprep.subr.mxu0 0.0
    %442 = vmatpush1.msra.mxu0 0.0
    %443 = vmatprep.subr.mxu0 0.0
    %444 = vmatpush1.msra.mxu0 0.0
    %445 = vmatprep.subr.mxu0 0.0
    %446 = vmatpush1.msra.mxu0 0.0
    %447 = vmatprep.mubr.f32.mxu0 0.0
    %448 = vmatmul.mubr.f32.gmra.mrb[0].mxu0 %v369
    %v449 = vpop.f32.mrb[0].mxu0
    %v450 = vadd.f32 %v350, %v449
    %v451 = vpop.f32.mrb[0].mxu0
    %452 = vmatprep.mubr.f32.mxu0 0.0
    %453 = vmatmul.mubr.f32.gmra.mrb[0].mxu0 %v372
    %v454 = vpop.f32.mrb[0].mxu0
    %v455 = vadd.f32 %v355, %v454
    %v456 = vpop.f32.mrb[0].mxu0
    %457 = vmatprep.mubr.f32.mxu0 0.0
    %458 = vmatmul.mubr.f32.gmra.mrb[0].mxu0 %v375
    %v459 = vpop.f32.mrb[0].mxu0
    %v460 = vadd.f32 %v360, %v459
    %v461 = vpop.f32.mrb[0].mxu0
    %462 = vmatprep.mubr.f32.mxu0 0.0
    %463 = vmatmul.mubr.f32.gmra.mrb[0].mxu0 %v378
    %v464 = vpop.f32.mrb[0].mxu0
    %v465 = vadd.f32 %v365, %v464
    %v466 = vpop.f32.mrb[0].mxu0
    %467 = vdwg.mxu0
    %s468 = scalar_lea.vmem %s1, 64
    %v469 = vld [vmem:[%s468] sm:$0xff]
    %v470 = vld [vmem:[%s468 + $0x8] sm:$0xff]
    %v471 = vld [vmem:[%s468 + $0x10] sm:$0xff]
    %v472 = vld [vmem:[%s468 + $0x18] sm:$0xff]
    %v474 = vsel %vm63, %v469, 0
    %v477 = vsel %vm63, %v470, 0
    %v480 = vsel %vm63, %v471, 0
    %v483 = vsel %vm63, %v472, 0
    %485 = vmatprep.subr.mxu0 0.0
    %486 = vmatpush1.msra.mxu0 %v51
    %487 = vmatprep.subr.mxu0 0.0
    %488 = vmatpush1.msra.mxu0 %v52
    %489 = vmatprep.subr.mxu0 0.0
    %490 = vmatpush1.msra.mxu0 %v53
    %491 = vmatprep.subr.mxu0 0.0
    %492 = vmatpush1.msra.mxu0 %v54
    %493 = vmatprep.subr.mxu0 0.0
    %494 = vmatpush1.msra.mxu0 %v55
    %495 = vmatprep.subr.mxu0 0.0
    %496 = vmatpush1.msra.mxu0 %v56
    %497 = vmatprep.subr.mxu0 0.0
    %498 = vmatpush1.msra.mxu0 %v57
    %499 = vmatprep.subr.mxu0 0.0
    %500 = vmatpush1.msra.mxu0 %v58
    %501 = vmatprep.subr.mxu0 0.0
    %502 = vmatpush1.msra.mxu0 0.0
    %503 = vmatprep.subr.mxu0 0.0
    %504 = vmatpush1.msra.mxu0 0.0
    %505 = vmatprep.subr.mxu0 0.0
    %506 = vmatpush1.msra.mxu0 0.0
    %507 = vmatprep.subr.mxu0 0.0
    %508 = vmatpush1.msra.mxu0 0.0
    %509 = vmatprep.subr.mxu0 0.0
    %510 = vmatpush1.msra.mxu0 0.0
    %511 = vmatprep.subr.mxu0 0.0
    %512 = vmatpush1.msra.mxu0 0.0
    %513 = vmatprep.subr.mxu0 0.0
    %514 = vmatpush1.msra.mxu0 0.0
    %515 = vmatprep.subr.mxu0 0.0
    %516 = vmatpush1.msra.mxu0 0.0
    %517 = vmatprep.subr.mxu0 0.0
    %518 = vmatpush1.msra.mxu0 0.0
    %519 = vmatprep.subr.mxu0 0.0
    %520 = vmatpush1.msra.mxu0 0.0
    %521 = vmatprep.subr.mxu0 0.0
    %522 = vmatpush1.msra.mxu0 0.0
    %523 = vmatprep.subr.mxu0 0.0
    %524 = vmatpush1.msra.mxu0 0.0
    %525 = vmatprep.subr.mxu0 0.0
    %526 = vmatpush1.msra.mxu0 0.0
    %527 = vmatprep.subr.mxu0 0.0
    %528 = vmatpush1.msra.mxu0 0.0
    %529 = vmatprep.subr.mxu0 0.0
    %530 = vmatpush1.msra.mxu0 0.0
    %531 = vmatprep.subr.mxu0 0.0
    %532 = vmatpush1.msra.mxu0 0.0
    %533 = vmatprep.subr.mxu0 0.0
    %534 = vmatpush1.msra.mxu0 0.0
    %535 = vmatprep.subr.mxu0 0.0
    %536 = vmatpush1.msra.mxu0 0.0
    %537 = vmatprep.subr.mxu0 0.0
    %538 = vmatpush1.msra.mxu0 0.0
    %539 = vmatprep.subr.mxu0 0.0
    %540 = vmatpush1.msra.mxu0 0.0
    %541 = vmatprep.subr.mxu0 0.0
    %542 = vmatpush1.msra.mxu0 0.0
    %543 = vmatprep.subr.mxu0 0.0
    %544 = vmatpush1.msra.mxu0 0.0
    %545 = vmatprep.subr.mxu0 0.0
    %546 = vmatpush1.msra.mxu0 0.0
    %547 = vmatprep.subr.mxu0 0.0
    %548 = vmatpush1.msra.mxu0 0.0
    %549 = vmatprep.mubr.f32.mxu0 0.0
    %550 = vmatmul.mubr.f32.gmra.mrb[0].mxu0 %v474
    %v551 = vpop.f32.mrb[0].mxu0
    %v552 = vadd.f32 0.0, %v551
    %v553 = vpop.f32.mrb[0].mxu0
    %554 = vmatprep.mubr.f32.mxu0 0.0
    %555 = vmatmul.mubr.f32.gmra.mrb[0].mxu0 %v477
    %v556 = vpop.f32.mrb[0].mxu0
    %v557 = vadd.f32 0.0, %v556
    %v558 = vpop.f32.mrb[0].mxu0
    %559 = vmatprep.mubr.f32.mxu0 0.0
    %560 = vmatmul.mubr.f32.gmra.mrb[0].mxu0 %v480
    %v561 = vpop.f32.mrb[0].mxu0
    %v562 = vadd.f32 0.0, %v561
    %v563 = vpop.f32.mrb[0].mxu0
    %564 = vmatprep.mubr.f32.mxu0 0.0
    %565 = vmatmul.mubr.f32.gmra.mrb[0].mxu0 %v483
    %v566 = vpop.f32.mrb[0].mxu0
    %v567 = vadd.f32 0.0, %v566
    %v568 = vpop.f32.mrb[0].mxu0
    %569 = vdwg.mxu0
    %s570 = scalar_lea.vmem %s2, 8
    %v571 = vld [vmem:[%s570] sm:$0xf]
    %v573 = vsel %vm266, %v552, 0
    %v576 = vsel %vm266, %v557, 0
    %v579 = vsel %vm266, %v562, 0
    %v582 = vsel %vm266, %v567, 0
    %v585 = vsel %vm279, %v571, 0
    %587 = vmatprep.subr.mxu0 0.0
    %588 = vmatpush1.msra.mxu0 %v585
    %589 = vmatprep.subr.mxu0 0.0
    %590 = vmatpush1.msra.mxu0 0.0
    %591 = vmatprep.subr.mxu0 0.0
    %592 = vmatpush1.msra.mxu0 0.0
    %593 = vmatprep.subr.mxu0 0.0
    %594 = vmatpush1.msra.mxu0 0.0
    %595 = vmatprep.subr.mxu0 0.0
    %596 = vmatpush1.msra.mxu0 0.0
    %597 = vmatprep.subr.mxu0 0.0
    %598 = vmatpush1.msra.mxu0 0.0
    %599 = vmatprep.subr.mxu0 0.0
    %600 = vmatpush1.msra.mxu0 0.0
    %601 = vmatprep.subr.mxu0 0.0
    %602 = vmatpush1.msra.mxu0 0.0
    %603 = vmatprep.subr.mxu0 0.0
    %604 = vmatpush1.msra.mxu0 0.0
    %605 = vmatprep.subr.mxu0 0.0
    %606 = vmatpush1.msra.mxu0 0.0
    %607 = vmatprep.subr.mxu0 0.0
    %608 = vmatpush1.msra.mxu0 0.0
    %609 = vmatprep.subr.mxu0 0.0
    %610 = vmatpush1.msra.mxu0 0.0
    %611 = vmatprep.subr.mxu0 0.0
    %612 = vmatpush1.msra.mxu0 0.0
    %613 = vmatprep.subr.mxu0 0.0
    %614 = vmatpush1.msra.mxu0 0.0
    %615 = vmatprep.subr.mxu0 0.0
    %616 = vmatpush1.msra.mxu0 0.0
    %617 = vmatprep.subr.mxu0 0.0
    %618 = vmatpush1.msra.mxu0 0.0
    %619 = vmatprep.subr.mxu0 0.0
    %620 = vmatpush1.msra.mxu0 0.0
    %621 = vmatprep.subr.mxu0 0.0
    %622 = vmatpush1.msra.mxu0 0.0
    %623 = vmatprep.subr.mxu0 0.0
    %624 = vmatpush1.msra.mxu0 0.0
    %625 = vmatprep.subr.mxu0 0.0
    %626 = vmatpush1.msra.mxu0 0.0
    %627 = vmatprep.subr.mxu0 0.0
    %628 = vmatpush1.msra.mxu0 0.0
    %629 = vmatprep.subr.mxu0 0.0
    %630 = vmatpush1.msra.mxu0 0.0
    %631 = vmatprep.subr.mxu0 0.0
    %632 = vmatpush1.msra.mxu0 0.0
    %633 = vmatprep.subr.mxu0 0.0
    %634 = vmatpush1.msra.mxu0 0.0
    %635 = vmatprep.subr.mxu0 0.0
    %636 = vmatpush1.msra.mxu0 0.0
    %637 = vmatprep.subr.mxu0 0.0
    %638 = vmatpush1.msra.mxu0 0.0
    %639 = vmatprep.subr.mxu0 0.0
    %640 = vmatpush1.msra.mxu0 0.0
    %641 = vmatprep.subr.mxu0 0.0
    %642 = vmatpush1.msra.mxu0 0.0
    %643 = vmatprep.subr.mxu0 0.0
    %644 = vmatpush1.msra.mxu0 0.0
    %645 = vmatprep.subr.mxu0 0.0
    %646 = vmatpush1.msra.mxu0 0.0
    %647 = vmatprep.subr.mxu0 0.0
    %648 = vmatpush1.msra.mxu0 0.0
    %649 = vmatprep.subr.mxu0 0.0
    %650 = vmatpush1.msra.mxu0 0.0
    %651 = vmatprep.mubr.f32.mxu0 0.0
    %652 = vmatmul.mubr.f32.gmra.mrb[0].mxu0 %v573
    %v653 = vpop.f32.mrb[0].mxu0
    %v654 = vadd.f32 0.0, %v653
    %v655 = vpop.f32.mrb[0].mxu0
    %656 = vmatprep.mubr.f32.mxu0 0.0
    %657 = vmatmul.mubr.f32.gmra.mrb[0].mxu0 %v576
    %v658 = vpop.f32.mrb[0].mxu0
    %v659 = vadd.f32 0.0, %v658
    %v660 = vpop.f32.mrb[0].mxu0
    %661 = vmatprep.mubr.f32.mxu0 0.0
    %662 = vmatmul.mubr.f32.gmra.mrb[0].mxu0 %v579
    %v663 = vpop.f32.mrb[0].mxu0
    %v664 = vadd.f32 0.0, %v663
    %v665 = vpop.f32.mrb[0].mxu0
    %666 = vmatprep.mubr.f32.mxu0 0.0
    %667 = vmatmul.mubr.f32.gmra.mrb[0].mxu0 %v582
    %v668 = vpop.f32.mrb[0].mxu0
    %v669 = vadd.f32 0.0, %v668
    %v670 = vpop.f32.mrb[0].mxu0
    %671 = vdwg.mxu0
    %v672 = vadd.f32 %v450, %v654
    %v673 = vadd.f32 %v455, %v659
    %v674 = vadd.f32 %v460, %v664
    %v675 = vadd.f32 %v465, %v669
    %v676 = vld [vmem:[%s3] sm:$0x1]
    %v678 = vlaneseq
    %v679 = vshrl.u32 %v678, 7
    %v680 = vsub.s32 0, %v679
    %v681 = vrot.slane %v676, %v680
    %v683 = vadd.f32 %v672, %v681
    %v684 = vadd.f32 %v673, %v681
    %v685 = vadd.f32 %v674, %v681
    %v686 = vadd.f32 %v675, %v681
    %v687 = vmax.f32 %v683, 0.0
    %v688 = vmax.f32 %v684, 0.0
    %v689 = vmax.f32 %v685, 0.0
    %v690 = vmax.f32 %v686, 0.0
    %v691 = vld [vmem:[%s4] sm:$0xff]
    %v692 = vld [vmem:[%s4 + $0x8] sm:$0xff]
    %vm693 = vcmask 261120
    %v695 = vsel %vm693, %v691, 0
    %v698 = vsel %vm693, %v692, 0
    %700 = vmatprep.subr.mxu0 0.0
    %701 = vmatpush1.msra.mxu0 %v687
    %702 = vmatprep.subr.mxu0 0.0
    %703 = vmatpush1.msra.mxu0 %v688
    %704 = vmatprep.subr.mxu0 0.0
    %705 = vmatpush1.msra.mxu0 %v689
    %706 = vmatprep.subr.mxu0 0.0
    %707 = vmatpush1.msra.mxu0 %v690
    %708 = vmatprep.subr.mxu0 0.0
    %709 = vmatpush1.msra.mxu0 0.0
    %710 = vmatprep.subr.mxu0 0.0
    %711 = vmatpush1.msra.mxu0 0.0
    %712 = vmatprep.subr.mxu0 0.0
    %713 = vmatpush1.msra.mxu0 0.0
    %714 = vmatprep.subr.mxu0 0.0
    %715 = vmatpush1.msra.mxu0 0.0
    %716 = vmatprep.subr.mxu0 0.0
    %717 = vmatpush1.msra.mxu0 0.0
    %718 = vmatprep.subr.mxu0 0.0
    %719 = vmatpush1.msra.mxu0 0.0
    %720 = vmatprep.subr.mxu0 0.0
    %721 = vmatpush1.msra.mxu0 0.0
    %722 = vmatprep.subr.mxu0 0.0
    %723 = vmatpush1.msra.mxu0 0.0
    %724 = vmatprep.subr.mxu0 0.0
    %725 = vmatpush1.msra.mxu0 0.0
    %726 = vmatprep.subr.mxu0 0.0
    %727 = vmatpush1.msra.mxu0 0.0
    %728 = vmatprep.subr.mxu0 0.0
    %729 = vmatpush1.msra.mxu0 0.0
    %730 = vmatprep.subr.mxu0 0.0
    %731 = vmatpush1.msra.mxu0 0.0
    %732 = vmatprep.subr.mxu0 0.0
    %733 = vmatpush1.msra.mxu0 0.0
    %734 = vmatprep.subr.mxu0 0.0
    %735 = vmatpush1.msra.mxu0 0.0
    %736 = vmatprep.subr.mxu0 0.0
    %737 = vmatpush1.msra.mxu0 0.0
    %738 = vmatprep.subr.mxu0 0.0
    %739 = vmatpush1.msra.mxu0 0.0
    %740 = vmatprep.subr.mxu0 0.0
    %741 = vmatpush1.msra.mxu0 0.0
    %742 = vmatprep.subr.mxu0 0.0
    %743 = vmatpush1.msra.mxu0 0.0
    %744 = vmatprep.subr.mxu0 0.0
    %745 = vmatpush1.msra.mxu0 0.0
    %746 = vmatprep.subr.mxu0 0.0
    %747 = vmatpush1.msra.mxu0 0.0
    %748 = vmatprep.subr.mxu0 0.0
    %749 = vmatpush1.msra.mxu0 0.0
    %750 = vmatprep.subr.mxu0 0.0
    %751 = vmatpush1.msra.mxu0 0.0
    %752 = vmatprep.subr.mxu0 0.0
    %753 = vmatpush1.msra.mxu0 0.0
    %754 = vmatprep.subr.mxu0 0.0
    %755 = vmatpush1.msra.mxu0 0.0
    %756 = vmatprep.subr.mxu0 0.0
    %757 = vmatpush1.msra.mxu0 0.0
    %758 = vmatprep.subr.mxu0 0.0
    %759 = vmatpush1.msra.mxu0 0.0
    %760 = vmatprep.subr.mxu0 0.0
    %761 = vmatpush1.msra.mxu0 0.0
    %762 = vmatprep.subr.mxu0 0.0
    %763 = vmatpush1.msra.mxu0 0.0
    %764 = vmatprep.mubr.f32.mxu0 0.0
    %765 = vmatmul.mubr.f32.gmra.mrb[0].mxu0 %v695
    %v766 = vpop.f32.mrb[0].mxu0
    %v767 = vadd.f32 0.0, %v766
    %v768 = vpop.f32.mrb[0].mxu0
    %769 = vmatprep.mubr.f32.mxu0 0.0
    %770 = vmatmul.mubr.f32.gmra.mrb[0].mxu0 %v698
    %v771 = vpop.f32.mrb[0].mxu0
    %v772 = vadd.f32 0.0, %v771
    %v773 = vpop.f32.mrb[0].mxu0
    %774 = vdwg.mxu0
    %v775 = vld [vmem:[%s5] sm:$0xff]
    %v776 = vld [vmem:[%s5 + $0x8] sm:$0xff]
    %v777 = vld [vmem:[%s5 + $0x10] sm:$0xff]
    %v778 = vld [vmem:[%s5 + $0x18] sm:$0xff]
    %s779 = scalar_lea.vmem %s4, 16
    %v780 = vld [vmem:[%s779] sm:$0xff]
    %v781 = vld [vmem:[%s779 + $0x8] sm:$0xff]
    %v783 = vsel %vm693, %v780, 0
    %v786 = vsel %vm693, %v781, 0
    %788 = vmatprep.subr.mxu0 0.0
    %789 = vmatpush1.msra.mxu0 %v687
    %790 = vmatprep.subr.mxu0 0.0
    %791 = vmatpush1.msra.mxu0 %v688
    %792 = vmatprep.subr.mxu0 0.0
    %793 = vmatpush1.msra.mxu0 %v689
    %794 = vmatprep.subr.mxu0 0.0
    %795 = vmatpush1.msra.mxu0 %v690
    %796 = vmatprep.subr.mxu0 0.0
    %797 = vmatpush1.msra.mxu0 0.0
    %798 = vmatprep.subr.mxu0 0.0
    %799 = vmatpush1.msra.mxu0 0.0
    %800 = vmatprep.subr.mxu0 0.0
    %801 = vmatpush1.msra.mxu0 0.0
    %802 = vmatprep.subr.mxu0 0.0
    %803 = vmatpush1.msra.mxu0 0.0
    %804 = vmatprep.subr.mxu0 0.0
    %805 = vmatpush1.msra.mxu0 0.0
    %806 = vmatprep.subr.mxu0 0.0
    %807 = vmatpush1.msra.mxu0 0.0
    %808 = vmatprep.subr.mxu0 0.0
    %809 = vmatpush1.msra.mxu0 0.0
    %810 = vmatprep.subr.mxu0 0.0
    %811 = vmatpush1.msra.mxu0 0.0
    %812 = vmatprep.subr.mxu0 0.0
    %813 = vmatpush1.msra.mxu0 0.0
    %814 = vmatprep.subr.mxu0 0.0
    %815 = vmatpush1.msra.mxu0 0.0
    %816 = vmatprep.subr.mxu0 0.0
    %817 = vmatpush1.msra.mxu0 0.0
    %818 = vmatprep.subr.mxu0 0.0
    %819 = vmatpush1.msra.mxu0 0.0
    %820 = vmatprep.subr.mxu0 0.0
    %821 = vmatpush1.msra.mxu0 0.0
    %822 = vmatprep.subr.mxu0 0.0
    %823 = vmatpush1.msra.mxu0 0.0
    %824 = vmatprep.subr.mxu0 0.0
    %825 = vmatpush1.msra.mxu0 0.0
    %826 = vmatprep.subr.mxu0 0.0
    %827 = vmatpush1.msra.mxu0 0.0
    %828 = vmatprep.subr.mxu0 0.0
    %829 = vmatpush1.msra.mxu0 0.0
    %830 = vmatprep.subr.mxu0 0.0
    %831 = vmatpush1.msra.mxu0 0.0
    %832 = vmatprep.subr.mxu0 0.0
    %833 = vmatpush1.msra.mxu0 0.0
    %834 = vmatprep.subr.mxu0 0.0
    %835 = vmatpush1.msra.mxu0 0.0
    %836 = vmatprep.subr.mxu0 0.0
    %837 = vmatpush1.msra.mxu0 0.0
    %838 = vmatprep.subr.mxu0 0.0
    %839 = vmatpush1.msra.mxu0 0.0
    %840 = vmatprep.subr.mxu0 0.0
    %841 = vmatpush1.msra.mxu0 0.0
    %842 = vmatprep.subr.mxu0 0.0
    %843 = vmatpush1.msra.mxu0 0.0
    %844 = vmatprep.subr.mxu0 0.0
    %845 = vmatpush1.msra.mxu0 0.0
    %846 = vmatprep.subr.mxu0 0.0
    %847 = vmatpush1.msra.mxu0 0.0
    %848 = vmatprep.subr.mxu0 0.0
    %849 = vmatpush1.msra.mxu0 0.0
    %850 = vmatprep.subr.mxu0 0.0
    %851 = vmatpush1.msra.mxu0 0.0
    %852 = vmatprep.mubr.f32.mxu0 0.0
    %853 = vmatmul.mubr.f32.gmra.mrb[0].mxu0 %v783
    %v854 = vpop.f32.mrb[0].mxu0
    %v855 = vadd.f32 0.0, %v854
    %v856 = vpop.f32.mrb[0].mxu0
    %857 = vmatprep.mubr.f32.mxu0 0.0
    %858 = vmatmul.mubr.f32.gmra.mrb[0].mxu0 %v786
    %v859 = vpop.f32.mrb[0].mxu0
    %v860 = vadd.f32 0.0, %v859
    %v861 = vpop.f32.mrb[0].mxu0
    %862 = vdwg.mxu0
    %s863 = scalar_lea.vmem %s5, 32
    %v864 = vld [vmem:[%s863] sm:$0xff]
    %v865 = vld [vmem:[%s863 + $0x8] sm:$0xff]
    %v866 = vld [vmem:[%s863 + $0x10] sm:$0xff]
    %v867 = vld [vmem:[%s863 + $0x18] sm:$0xff]
    %v869 = vsel %vm693, %v855, 0
    %v872 = vsel %vm693, %v860, 0
    %874 = vmatprep.subr.mxu0 0.0
    %875 = vmatpush1.msra.mxu0 %v864
    %876 = vmatprep.subr.mxu0 0.0
    %877 = vmatpush1.msra.mxu0 %v865
    %878 = vmatprep.subr.mxu0 0.0
    %879 = vmatpush1.msra.mxu0 %v866
    %880 = vmatprep.subr.mxu0 0.0
    %881 = vmatpush1.msra.mxu0 %v867
    %882 = vmatprep.subr.mxu0 0.0
    %883 = vmatpush1.msra.mxu0 0.0
    %884 = vmatprep.subr.mxu0 0.0
    %885 = vmatpush1.msra.mxu0 0.0
    %886 = vmatprep.subr.mxu0 0.0
    %887 = vmatpush1.msra.mxu0 0.0
    %888 = vmatprep.subr.mxu0 0.0
    %889 = vmatpush1.msra.mxu0 0.0
    %890 = vmatprep.subr.mxu0 0.0
    %891 = vmatpush1.msra.mxu0 0.0
    %892 = vmatprep.subr.mxu0 0.0
    %893 = vmatpush1.msra.mxu0 0.0
    %894 = vmatprep.subr.mxu0 0.0
    %895 = vmatpush1.msra.mxu0 0.0
    %896 = vmatprep.subr.mxu0 0.0
    %897 = vmatpush1.msra.mxu0 0.0
    %898 = vmatprep.subr.mxu0 0.0
    %899 = vmatpush1.msra.mxu0 0.0
    %900 = vmatprep.subr.mxu0 0.0
    %901 = vmatpush1.msra.mxu0 0.0
    %902 = vmatprep.subr.mxu0 0.0
    %903 = vmatpush1.msra.mxu0 0.0
    %904 = vmatprep.subr.mxu0 0.0
    %905 = vmatpush1.msra.mxu0 0.0
    %906 = vmatprep.subr.mxu0 0.0
    %907 = vmatpush1.msra.mxu0 0.0
    %908 = vmatprep.subr.mxu0 0.0
    %909 = vmatpush1.msra.mxu0 0.0
    %910 = vmatprep.subr.mxu0 0.0
    %911 = vmatpush1.msra.mxu0 0.0
    %912 = vmatprep.subr.mxu0 0.0
    %913 = vmatpush1.msra.mxu0 0.0
    %914 = vmatprep.subr.mxu0 0.0
    %915 = vmatpush1.msra.mxu0 0.0
    %916 = vmatprep.subr.mxu0 0.0
    %917 = vmatpush1.msra.mxu0 0.0
    %918 = vmatprep.subr.mxu0 0.0
    %919 = vmatpush1.msra.mxu0 0.0
    %920 = vmatprep.subr.mxu0 0.0
    %921 = vmatpush1.msra.mxu0 0.0
    %922 = vmatprep.subr.mxu0 0.0
    %923 = vmatpush1.msra.mxu0 0.0
    %924 = vmatprep.subr.mxu0 0.0
    %925 = vmatpush1.msra.mxu0 0.0
    %926 = vmatprep.subr.mxu0 0.0
    %927 = vmatpush1.msra.mxu0 0.0
    %928 = vmatprep.subr.mxu0 0.0
    %929 = vmatpush1.msra.mxu0 0.0
    %930 = vmatprep.subr.mxu0 0.0
    %931 = vmatpush1.msra.mxu0 0.0
    %932 = vmatprep.subr.mxu0 0.0
    %933 = vmatpush1.msra.mxu0 0.0
    %934 = vmatprep.subr.mxu0 0.0
    %935 = vmatpush1.msra.mxu0 0.0
    %936 = vmatprep.subr.mxu0 0.0
    %937 = vmatpush1.msra.mxu0 0.0
    %938 = vmatprep.mubr.f32.mxu0 0.0
    %939 = vmatmul.mubr.f32.gmra.mrb[0].mxu0 %v869
    %v940 = vpop.f32.mrb[0].mxu0
    %v941 = vadd.f32 0.0, %v940
    %v942 = vpop.f32.mrb[0].mxu0
    %943 = vmatprep.mubr.f32.mxu0 0.0
    %944 = vmatmul.mubr.f32.gmra.mrb[0].mxu0 %v872
    %v945 = vpop.f32.mrb[0].mxu0
    %v946 = vadd.f32 0.0, %v945
    %v947 = vpop.f32.mrb[0].mxu0
    %948 = vdwg.mxu0
    %v950 = vsel %vm693, %v767, 0
    %v953 = vsel %vm693, %v772, 0
    %955 = vmatprep.subr.mxu0 0.0
    %956 = vmatpush1.msra.mxu0 %v775
    %957 = vmatprep.subr.mxu0 0.0
    %958 = vmatpush1.msra.mxu0 %v776
    %959 = vmatprep.subr.mxu0 0.0
    %960 = vmatpush1.msra.mxu0 %v777
    %961 = vmatprep.subr.mxu0 0.0
    %962 = vmatpush1.msra.mxu0 %v778
    %963 = vmatprep.subr.mxu0 0.0
    %964 = vmatpush1.msra.mxu0 0.0
    %965 = vmatprep.subr.mxu0 0.0
    %966 = vmatpush1.msra.mxu0 0.0
    %967 = vmatprep.subr.mxu0 0.0
    %968 = vmatpush1.msra.mxu0 0.0
    %969 = vmatprep.subr.mxu0 0.0
    %970 = vmatpush1.msra.mxu0 0.0
    %971 = vmatprep.subr.mxu0 0.0
    %972 = vmatpush1.msra.mxu0 0.0
    %973 = vmatprep.subr.mxu0 0.0
    %974 = vmatpush1.msra.mxu0 0.0
    %975 = vmatprep.subr.mxu0 0.0
    %976 = vmatpush1.msra.mxu0 0.0
    %977 = vmatprep.subr.mxu0 0.0
    %978 = vmatpush1.msra.mxu0 0.0
    %979 = vmatprep.subr.mxu0 0.0
    %980 = vmatpush1.msra.mxu0 0.0
    %981 = vmatprep.subr.mxu0 0.0
    %982 = vmatpush1.msra.mxu0 0.0
    %983 = vmatprep.subr.mxu0 0.0
    %984 = vmatpush1.msra.mxu0 0.0
    %985 = vmatprep.subr.mxu0 0.0
    %986 = vmatpush1.msra.mxu0 0.0
    %987 = vmatprep.subr.mxu0 0.0
    %988 = vmatpush1.msra.mxu0 0.0
    %989 = vmatprep.subr.mxu0 0.0
    %990 = vmatpush1.msra.mxu0 0.0
    %991 = vmatprep.subr.mxu0 0.0
    %992 = vmatpush1.msra.mxu0 0.0
    %993 = vmatprep.subr.mxu0 0.0
    %994 = vmatpush1.msra.mxu0 0.0
    %995 = vmatprep.subr.mxu0 0.0
    %996 = vmatpush1.msra.mxu0 0.0
    %997 = vmatprep.subr.mxu0 0.0
    %998 = vmatpush1.msra.mxu0 0.0
    %999 = vmatprep.subr.mxu0 0.0
    %1000 = vmatpush1.msra.mxu0 0.0
    %1001 = vmatprep.subr.mxu0 0.0
    %1002 = vmatpush1.msra.mxu0 0.0
    %1003 = vmatprep.subr.mxu0 0.0
    %1004 = vmatpush1.msra.mxu0 0.0
    %1005 = vmatprep.subr.mxu0 0.0
    %1006 = vmatpush1.msra.mxu0 0.0
    %1007 = vmatprep.subr.mxu0 0.0
    %1008 = vmatpush1.msra.mxu0 0.0
    %1009 = vmatprep.subr.mxu0 0.0
    %1010 = vmatpush1.msra.mxu0 0.0
    %1011 = vmatprep.subr.mxu0 0.0
    %1012 = vmatpush1.msra.mxu0 0.0
    %1013 = vmatprep.subr.mxu0 0.0
    %1014 = vmatpush1.msra.mxu0 0.0
    %1015 = vmatprep.subr.mxu0 0.0
    %1016 = vmatpush1.msra.mxu0 0.0
    %1017 = vmatprep.subr.mxu0 0.0
    %1018 = vmatpush1.msra.mxu0 0.0
    %1019 = vmatprep.mubr.f32.mxu0 0.0
    %1020 = vmatmul.mubr.f32.gmra.mrb[0].mxu0 %v950
    %v1021 = vpop.f32.mrb[0].mxu0
    %v1022 = vadd.f32 %v941, %v1021
    %v1023 = vpop.f32.mrb[0].mxu0
    %1024 = vmatprep.mubr.f32.mxu0 0.0
    %1025 = vmatmul.mubr.f32.gmra.mrb[0].mxu0 %v953
    %v1026 = vpop.f32.mrb[0].mxu0
    %v1027 = vadd.f32 %v946, %v1026
    %v1028 = vpop.f32.mrb[0].mxu0
    %1029 = vdwg.mxu0
    %s1030 = scalar_lea.vmem %s4, 32
    %v1031 = vld [vmem:[%s1030] sm:$0xff]
    %v1032 = vld [vmem:[%s1030 + $0x8] sm:$0xff]
    %v1034 = vsel %vm693, %v1031, 0
    %v1037 = vsel %vm693, %v1032, 0
    %1039 = vmatprep.subr.mxu0 0.0
    %1040 = vmatpush1.msra.mxu0 %v687
    %1041 = vmatprep.subr.mxu0 0.0
    %1042 = vmatpush1.msra.mxu0 %v688
    %1043 = vmatprep.subr.mxu0 0.0
    %1044 = vmatpush1.msra.mxu0 %v689
    %1045 = vmatprep.subr.mxu0 0.0
    %1046 = vmatpush1.msra.mxu0 %v690
    %1047 = vmatprep.subr.mxu0 0.0
    %1048 = vmatpush1.msra.mxu0 0.0
    %1049 = vmatprep.subr.mxu0 0.0
    %1050 = vmatpush1.msra.mxu0 0.0
    %1051 = vmatprep.subr.mxu0 0.0
    %1052 = vmatpush1.msra.mxu0 0.0
    %1053 = vmatprep.subr.mxu0 0.0
    %1054 = vmatpush1.msra.mxu0 0.0
    %1055 = vmatprep.subr.mxu0 0.0
    %1056 = vmatpush1.msra.mxu0 0.0
    %1057 = vmatprep.subr.mxu0 0.0
    %1058 = vmatpush1.msra.mxu0 0.0
    %1059 = vmatprep.subr.mxu0 0.0
    %1060 = vmatpush1.msra.mxu0 0.0
    %1061 = vmatprep.subr.mxu0 0.0
    %1062 = vmatpush1.msra.mxu0 0.0
    %1063 = vmatprep.subr.mxu0 0.0
    %1064 = vmatpush1.msra.mxu0 0.0
    %1065 = vmatprep.subr.mxu0 0.0
    %1066 = vmatpush1.msra.mxu0 0.0
    %1067 = vmatprep.subr.mxu0 0.0
    %1068 = vmatpush1.msra.mxu0 0.0
    %1069 = vmatprep.subr.mxu0 0.0
    %1070 = vmatpush1.msra.mxu0 0.0
    %1071 = vmatprep.subr.mxu0 0.0
    %1072 = vmatpush1.msra.mxu0 0.0
    %1073 = vmatprep.subr.mxu0 0.0
    %1074 = vmatpush1.msra.mxu0 0.0
    %1075 = vmatprep.subr.mxu0 0.0
    %1076 = vmatpush1.msra.mxu0 0.0
    %1077 = vmatprep.subr.mxu0 0.0
    %1078 = vmatpush1.msra.mxu0 0.0
    %1079 = vmatprep.subr.mxu0 0.0
    %1080 = vmatpush1.msra.mxu0 0.0
    %1081 = vmatprep.subr.mxu0 0.0
    %1082 = vmatpush1.msra.mxu0 0.0
    %1083 = vmatprep.subr.mxu0 0.0
    %1084 = vmatpush1.msra.mxu0 0.0
    %1085 = vmatprep.subr.mxu0 0.0
    %1086 = vmatpush1.msra.mxu0 0.0
    %1087 = vmatprep.subr.mxu0 0.0
    %1088 = vmatpush1.msra.mxu0 0.0
    %1089 = vmatprep.subr.mxu0 0.0
    %1090 = vmatpush1.msra.mxu0 0.0
    %1091 = vmatprep.subr.mxu0 0.0
    %1092 = vmatpush1.msra.mxu0 0.0
    %1093 = vmatprep.subr.mxu0 0.0
    %1094 = vmatpush1.msra.mxu0 0.0
    %1095 = vmatprep.subr.mxu0 0.0
    %1096 = vmatpush1.msra.mxu0 0.0
    %1097 = vmatprep.subr.mxu0 0.0
    %1098 = vmatpush1.msra.mxu0 0.0
    %1099 = vmatprep.subr.mxu0 0.0
    %1100 = vmatpush1.msra.mxu0 0.0
    %1101 = vmatprep.subr.mxu0 0.0
    %1102 = vmatpush1.msra.mxu0 0.0
    %1103 = vmatprep.mubr.f32.mxu0 0.0
    %1104 = vmatmul.mubr.f32.gmra.mrb[0].mxu0 %v1034
    %v1105 = vpop.f32.mrb[0].mxu0
    %v1106 = vadd.f32 0.0, %v1105
    %v1107 = vpop.f32.mrb[0].mxu0
    %1108 = vmatprep.mubr.f32.mxu0 0.0
    %1109 = vmatmul.mubr.f32.gmra.mrb[0].mxu0 %v1037
    %v1110 = vpop.f32.mrb[0].mxu0
    %v1111 = vadd.f32 0.0, %v1110
    %v1112 = vpop.f32.mrb[0].mxu0
    %1113 = vdwg.mxu0
    %s1114 = scalar_lea.vmem %s5, 64
    %v1115 = vld [vmem:[%s1114] sm:$0xff]
    %v1116 = vld [vmem:[%s1114 + $0x8] sm:$0xff]
    %v1117 = vld [vmem:[%s1114 + $0x10] sm:$0xff]
    %v1118 = vld [vmem:[%s1114 + $0x18] sm:$0xff]
    %v1120 = vsel %vm693, %v1106, 0
    %v1123 = vsel %vm693, %v1111, 0
    %1125 = vmatprep.subr.mxu0 0.0
    %1126 = vmatpush1.msra.mxu0 %v1115
    %1127 = vmatprep.subr.mxu0 0.0
    %1128 = vmatpush1.msra.mxu0 %v1116
    %1129 = vmatprep.subr.mxu0 0.0
    %1130 = vmatpush1.msra.mxu0 %v1117
    %1131 = vmatprep.subr.mxu0 0.0
    %1132 = vmatpush1.msra.mxu0 %v1118
    %1133 = vmatprep.subr.mxu0 0.0
    %1134 = vmatpush1.msra.mxu0 0.0
    %1135 = vmatprep.subr.mxu0 0.0
    %1136 = vmatpush1.msra.mxu0 0.0
    %1137 = vmatprep.subr.mxu0 0.0
    %1138 = vmatpush1.msra.mxu0 0.0
    %1139 = vmatprep.subr.mxu0 0.0
    %1140 = vmatpush1.msra.mxu0 0.0
    %1141 = vmatprep.subr.mxu0 0.0
    %1142 = vmatpush1.msra.mxu0 0.0
    %1143 = vmatprep.subr.mxu0 0.0
    %1144 = vmatpush1.msra.mxu0 0.0
    %1145 = vmatprep.subr.mxu0 0.0
    %1146 = vmatpush1.msra.mxu0 0.0
    %1147 = vmatprep.subr.mxu0 0.0
    %1148 = vmatpush1.msra.mxu0 0.0
    %1149 = vmatprep.subr.mxu0 0.0
    %1150 = vmatpush1.msra.mxu0 0.0
    %1151 = vmatprep.subr.mxu0 0.0
    %1152 = vmatpush1.msra.mxu0 0.0
    %1153 = vmatprep.subr.mxu0 0.0
    %1154 = vmatpush1.msra.mxu0 0.0
    %1155 = vmatprep.subr.mxu0 0.0
    %1156 = vmatpush1.msra.mxu0 0.0
    %1157 = vmatprep.subr.mxu0 0.0
    %1158 = vmatpush1.msra.mxu0 0.0
    %1159 = vmatprep.subr.mxu0 0.0
    %1160 = vmatpush1.msra.mxu0 0.0
    %1161 = vmatprep.subr.mxu0 0.0
    %1162 = vmatpush1.msra.mxu0 0.0
    %1163 = vmatprep.subr.mxu0 0.0
    %1164 = vmatpush1.msra.mxu0 0.0
    %1165 = vmatprep.subr.mxu0 0.0
    %1166 = vmatpush1.msra.mxu0 0.0
    %1167 = vmatprep.subr.mxu0 0.0
    %1168 = vmatpush1.msra.mxu0 0.0
    %1169 = vmatprep.subr.mxu0 0.0
    %1170 = vmatpush1.msra.mxu0 0.0
    %1171 = vmatprep.subr.mxu0 0.0
    %1172 = vmatpush1.msra.mxu0 0.0
    %1173 = vmatprep.subr.mxu0 0.0
    %1174 = vmatpush1.msra.mxu0 0.0
    %1175 = vmatprep.subr.mxu0 0.0
    %1176 = vmatpush1.msra.mxu0 0.0
    %1177 = vmatprep.subr.mxu0 0.0
    %1178 = vmatpush1.msra.mxu0 0.0
    %1179 = vmatprep.subr.mxu0 0.0
    %1180 = vmatpush1.msra.mxu0 0.0
    %1181 = vmatprep.subr.mxu0 0.0
    %1182 = vmatpush1.msra.mxu0 0.0
    %1183 = vmatprep.subr.mxu0 0.0
    %1184 = vmatpush1.msra.mxu0 0.0
    %1185 = vmatprep.subr.mxu0 0.0
    %1186 = vmatpush1.msra.mxu0 0.0
    %1187 = vmatprep.subr.mxu0 0.0
    %1188 = vmatpush1.msra.mxu0 0.0
    %1189 = vmatprep.mubr.f32.mxu0 0.0
    %1190 = vmatmul.mubr.f32.gmra.mrb[0].mxu0 %v1120
    %v1191 = vpop.f32.mrb[0].mxu0
    %v1192 = vadd.f32 0.0, %v1191
    %v1193 = vpop.f32.mrb[0].mxu0
    %1194 = vmatprep.mubr.f32.mxu0 0.0
    %1195 = vmatmul.mubr.f32.gmra.mrb[0].mxu0 %v1123
    %v1196 = vpop.f32.mrb[0].mxu0
    %v1197 = vadd.f32 0.0, %v1196
    %v1198 = vpop.f32.mrb[0].mxu0
    %1199 = vdwg.mxu0
    %v1200 = vadd.f32 %v1022, %v1192
    %v1201 = vadd.f32 %v1027, %v1197
    %v1202 = vld [vmem:[%s6] sm:$0x1]
    %v1204 = vlaneseq
    %v1205 = vshrl.u32 %v1204, 7
    %v1206 = vsub.s32 0, %v1205
    %v1207 = vrot.slane %v1202, %v1206
    %v1209 = vadd.f32 %v1200, %v1207
    %v1210 = vadd.f32 %v1201, %v1207
    %v1211 = vmax.f32 %v1209, 0.0
    %v1212 = vmax.f32 %v1210, 0.0
    %v1213 = vld [vmem:[%s7] sm:$0xff]
    %vm1214 = vcmask 130048
    %v1216 = vsel %vm1214, %v1213, 0
    %1218 = vmatprep.subr.mxu0 0.0
    %1219 = vmatpush1.msra.mxu0 %v1211
    %1220 = vmatprep.subr.mxu0 0.0
    %1221 = vmatpush1.msra.mxu0 %v1212
    %1222 = vmatprep.subr.mxu0 0.0
    %1223 = vmatpush1.msra.mxu0 0.0
    %1224 = vmatprep.subr.mxu0 0.0
    %1225 = vmatpush1.msra.mxu0 0.0
    %1226 = vmatprep.subr.mxu0 0.0
    %1227 = vmatpush1.msra.mxu0 0.0
    %1228 = vmatprep.subr.mxu0 0.0
    %1229 = vmatpush1.msra.mxu0 0.0
    %1230 = vmatprep.subr.mxu0 0.0
    %1231 = vmatpush1.msra.mxu0 0.0
    %1232 = vmatprep.subr.mxu0 0.0
    %1233 = vmatpush1.msra.mxu0 0.0
    %1234 = vmatprep.subr.mxu0 0.0
    %1235 = vmatpush1.msra.mxu0 0.0
    %1236 = vmatprep.subr.mxu0 0.0
    %1237 = vmatpush1.msra.mxu0 0.0
    %1238 = vmatprep.subr.mxu0 0.0
    %1239 = vmatpush1.msra.mxu0 0.0
    %1240 = vmatprep.subr.mxu0 0.0
    %1241 = vmatpush1.msra.mxu0 0.0
    %1242 = vmatprep.subr.mxu0 0.0
    %1243 = vmatpush1.msra.mxu0 0.0
    %1244 = vmatprep.subr.mxu0 0.0
    %1245 = vmatpush1.msra.mxu0 0.0
    %1246 = vmatprep.subr.mxu0 0.0
    %1247 = vmatpush1.msra.mxu0 0.0
    %1248 = vmatprep.subr.mxu0 0.0
    %1249 = vmatpush1.msra.mxu0 0.0
    %1250 = vmatprep.subr.mxu0 0.0
    %1251 = vmatpush1.msra.mxu0 0.0
    %1252 = vmatprep.subr.mxu0 0.0
    %1253 = vmatpush1.msra.mxu0 0.0
    %1254 = vmatprep.subr.mxu0 0.0
    %1255 = vmatpush1.msra.mxu0 0.0
    %1256 = vmatprep.subr.mxu0 0.0
    %1257 = vmatpush1.msra.mxu0 0.0
    %1258 = vmatprep.subr.mxu0 0.0
    %1259 = vmatpush1.msra.mxu0 0.0
    %1260 = vmatprep.subr.mxu0 0.0
    %1261 = vmatpush1.msra.mxu0 0.0
    %1262 = vmatprep.subr.mxu0 0.0
    %1263 = vmatpush1.msra.mxu0 0.0
    %1264 = vmatprep.subr.mxu0 0.0
    %1265 = vmatpush1.msra.mxu0 0.0
    %1266 = vmatprep.subr.mxu0 0.0
    %1267 = vmatpush1.msra.mxu0 0.0
    %1268 = vmatprep.subr.mxu0 0.0
    %1269 = vmatpush1.msra.mxu0 0.0
    %1270 = vmatprep.subr.mxu0 0.0
    %1271 = vmatpush1.msra.mxu0 0.0
    %1272 = vmatprep.subr.mxu0 0.0
    %1273 = vmatpush1.msra.mxu0 0.0
    %1274 = vmatprep.subr.mxu0 0.0
    %1275 = vmatpush1.msra.mxu0 0.0
    %1276 = vmatprep.subr.mxu0 0.0
    %1277 = vmatpush1.msra.mxu0 0.0
    %1278 = vmatprep.subr.mxu0 0.0
    %1279 = vmatpush1.msra.mxu0 0.0
    %1280 = vmatprep.subr.mxu0 0.0
    %1281 = vmatpush1.msra.mxu0 0.0
    %1282 = vmatprep.mubr.f32.mxu0 0.0
    %1283 = vmatmul.mubr.f32.gmra.mrb[0].mxu0 %v1216
    %v1284 = vpop.f32.mrb[0].mxu0
    %v1285 = vadd.f32 0.0, %v1284
    %v1286 = vpop.f32.mrb[0].mxu0
    %1287 = vdwg.mxu0
    %v1288 = vld [vmem:[%s8] sm:$0xff]
    %v1289 = vld [vmem:[%s8 + $0x8] sm:$0xff]
    %v1290 = vld [vmem:[%s8 + $0x10] sm:$0xff]
    %v1291 = vld [vmem:[%s8 + $0x18] sm:$0xff]
    %s1292 = scalar_lea.vmem %s7, 8
    %v1293 = vld [vmem:[%s1292] sm:$0xff]
    %v1295 = vsel %vm1214, %v1293, 0
    %1297 = vmatprep.subr.mxu0 0.0
    %1298 = vmatpush1.msra.mxu0 %v1211
    %1299 = vmatprep.subr.mxu0 0.0
    %1300 = vmatpush1.msra.mxu0 %v1212
    %1301 = vmatprep.subr.mxu0 0.0
    %1302 = vmatpush1.msra.mxu0 0.0
    %1303 = vmatprep.subr.mxu0 0.0
    %1304 = vmatpush1.msra.mxu0 0.0
    %1305 = vmatprep.subr.mxu0 0.0
    %1306 = vmatpush1.msra.mxu0 0.0
    %1307 = vmatprep.subr.mxu0 0.0
    %1308 = vmatpush1.msra.mxu0 0.0
    %1309 = vmatprep.subr.mxu0 0.0
    %1310 = vmatpush1.msra.mxu0 0.0
    %1311 = vmatprep.subr.mxu0 0.0
    %1312 = vmatpush1.msra.mxu0 0.0
    %1313 = vmatprep.subr.mxu0 0.0
    %1314 = vmatpush1.msra.mxu0 0.0
    %1315 = vmatprep.subr.mxu0 0.0
    %1316 = vmatpush1.msra.mxu0 0.0
    %1317 = vmatprep.subr.mxu0 0.0
    %1318 = vmatpush1.msra.mxu0 0.0
    %1319 = vmatprep.subr.mxu0 0.0
    %1320 = vmatpush1.msra.mxu0 0.0
    %1321 = vmatprep.subr.mxu0 0.0
    %1322 = vmatpush1.msra.mxu0 0.0
    %1323 = vmatprep.subr.mxu0 0.0
    %1324 = vmatpush1.msra.mxu0 0.0
    %1325 = vmatprep.subr.mxu0 0.0
    %1326 = vmatpush1.msra.mxu0 0.0
    %1327 = vmatprep.subr.mxu0 0.0
    %1328 = vmatpush1.msra.mxu0 0.0
    %1329 = vmatprep.subr.mxu0 0.0
    %1330 = vmatpush1.msra.mxu0 0.0
    %1331 = vmatprep.subr.mxu0 0.0
    %1332 = vmatpush1.msra.mxu0 0.0
    %1333 = vmatprep.subr.mxu0 0.0
    %1334 = vmatpush1.msra.mxu0 0.0
    %1335 = vmatprep.subr.mxu0 0.0
    %1336 = vmatpush1.msra.mxu0 0.0
    %1337 = vmatprep.subr.mxu0 0.0
    %1338 = vmatpush1.msra.mxu0 0.0
    %1339 = vmatprep.subr.mxu0 0.0
    %1340 = vmatpush1.msra.mxu0 0.0
    %1341 = vmatprep.subr.mxu0 0.0
    %1342 = vmatpush1.msra.mxu0 0.0
    %1343 = vmatprep.subr.mxu0 0.0
    %1344 = vmatpush1.msra.mxu0 0.0
    %1345 = vmatprep.subr.mxu0 0.0
    %1346 = vmatpush1.msra.mxu0 0.0
    %1347 = vmatprep.subr.mxu0 0.0
    %1348 = vmatpush1.msra.mxu0 0.0
    %1349 = vmatprep.subr.mxu0 0.0
    %1350 = vmatpush1.msra.mxu0 0.0
    %1351 = vmatprep.subr.mxu0 0.0
    %1352 = vmatpush1.msra.mxu0 0.0
    %1353 = vmatprep.subr.mxu0 0.0
    %1354 = vmatpush1.msra.mxu0 0.0
    %1355 = vmatprep.subr.mxu0 0.0
    %1356 = vmatpush1.msra.mxu0 0.0
    %1357 = vmatprep.subr.mxu0 0.0
    %1358 = vmatpush1.msra.mxu0 0.0
    %1359 = vmatprep.subr.mxu0 0.0
    %1360 = vmatpush1.msra.mxu0 0.0
    %1361 = vmatprep.mubr.f32.mxu0 0.0
    %1362 = vmatmul.mubr.f32.gmra.mrb[0].mxu0 %v1295
    %v1363 = vpop.f32.mrb[0].mxu0
    %v1364 = vadd.f32 0.0, %v1363
    %v1365 = vpop.f32.mrb[0].mxu0
    %1366 = vdwg.mxu0
    %s1367 = scalar_lea.vmem %s8, 32
    %v1368 = vld [vmem:[%s1367] sm:$0xff]
    %v1369 = vld [vmem:[%s1367 + $0x8] sm:$0xff]
    %v1370 = vld [vmem:[%s1367 + $0x10] sm:$0xff]
    %v1371 = vld [vmem:[%s1367 + $0x18] sm:$0xff]
    %v1373 = vsel %vm693, %v1364, 0
    %1375 = vmatprep.subr.mxu0 0.0
    %1376 = vmatpush1.msra.mxu0 %v1368
    %1377 = vmatprep.subr.mxu0 0.0
    %1378 = vmatpush1.msra.mxu0 %v1369
    %1379 = vmatprep.subr.mxu0 0.0
    %1380 = vmatpush1.msra.mxu0 %v1370
    %1381 = vmatprep.subr.mxu0 0.0
    %1382 = vmatpush1.msra.mxu0 %v1371
    %1383 = vmatprep.subr.mxu0 0.0
    %1384 = vmatpush1.msra.mxu0 0.0
    %1385 = vmatprep.subr.mxu0 0.0
    %1386 = vmatpush1.msra.mxu0 0.0
    %1387 = vmatprep.subr.mxu0 0.0
    %1388 = vmatpush1.msra.mxu0 0.0
    %1389 = vmatprep.subr.mxu0 0.0
    %1390 = vmatpush1.msra.mxu0 0.0
    %1391 = vmatprep.subr.mxu0 0.0
    %1392 = vmatpush1.msra.mxu0 0.0
    %1393 = vmatprep.subr.mxu0 0.0
    %1394 = vmatpush1.msra.mxu0 0.0
    %1395 = vmatprep.subr.mxu0 0.0
    %1396 = vmatpush1.msra.mxu0 0.0
    %1397 = vmatprep.subr.mxu0 0.0
    %1398 = vmatpush1.msra.mxu0 0.0
    %1399 = vmatprep.subr.mxu0 0.0
    %1400 = vmatpush1.msra.mxu0 0.0
    %1401 = vmatprep.subr.mxu0 0.0
    %1402 = vmatpush1.msra.mxu0 0.0
    %1403 = vmatprep.subr.mxu0 0.0
    %1404 = vmatpush1.msra.mxu0 0.0
    %1405 = vmatprep.subr.mxu0 0.0
    %1406 = vmatpush1.msra.mxu0 0.0
    %1407 = vmatprep.subr.mxu0 0.0
    %1408 = vmatpush1.msra.mxu0 0.0
    %1409 = vmatprep.subr.mxu0 0.0
    %1410 = vmatpush1.msra.mxu0 0.0
    %1411 = vmatprep.subr.mxu0 0.0
    %1412 = vmatpush1.msra.mxu0 0.0
    %1413 = vmatprep.subr.mxu0 0.0
    %1414 = vmatpush1.msra.mxu0 0.0
    %1415 = vmatprep.subr.mxu0 0.0
    %1416 = vmatpush1.msra.mxu0 0.0
    %1417 = vmatprep.subr.mxu0 0.0
    %1418 = vmatpush1.msra.mxu0 0.0
    %1419 = vmatprep.subr.mxu0 0.0
    %1420 = vmatpush1.msra.mxu0 0.0
    %1421 = vmatprep.subr.mxu0 0.0
    %1422 = vmatpush1.msra.mxu0 0.0
    %1423 = vmatprep.subr.mxu0 0.0
    %1424 = vmatpush1.msra.mxu0 0.0
    %1425 = vmatprep.subr.mxu0 0.0
    %1426 = vmatpush1.msra.mxu0 0.0
    %1427 = vmatprep.subr.mxu0 0.0
    %1428 = vmatpush1.msra.mxu0 0.0
    %1429 = vmatprep.subr.mxu0 0.0
    %1430 = vmatpush1.msra.mxu0 0.0
    %1431 = vmatprep.subr.mxu0 0.0
    %1432 = vmatpush1.msra.mxu0 0.0
    %1433 = vmatprep.subr.mxu0 0.0
    %1434 = vmatpush1.msra.mxu0 0.0
    %1435 = vmatprep.subr.mxu0 0.0
    %1436 = vmatpush1.msra.mxu0 0.0
    %1437 = vmatprep.subr.mxu0 0.0
    %1438 = vmatpush1.msra.mxu0 0.0
    %1439 = vmatprep.mubr.f32.mxu0 0.0
    %1440 = vmatmul.mubr.f32.gmra.mrb[0].mxu0 %v1373
    %v1441 = vpop.f32.mrb[0].mxu0
    %v1442 = vadd.f32 0.0, %v1441
    %v1443 = vpop.f32.mrb[0].mxu0
    %1444 = vdwg.mxu0
    %v1446 = vsel %vm693, %v1285, 0
    %1448 = vmatprep.subr.mxu0 0.0
    %1449 = vmatpush1.msra.mxu0 %v1288
    %1450 = vmatprep.subr.mxu0 0.0
    %1451 = vmatpush1.msra.mxu0 %v1289
    %1452 = vmatprep.subr.mxu0 0.0
    %1453 = vmatpush1.msra.mxu0 %v1290
    %1454 = vmatprep.subr.mxu0 0.0
    %1455 = vmatpush1.msra.mxu0 %v1291
    %1456 = vmatprep.subr.mxu0 0.0
    %1457 = vmatpush1.msra.mxu0 0.0
    %1458 = vmatprep.subr.mxu0 0.0
    %1459 = vmatpush1.msra.mxu0 0.0
    %1460 = vmatprep.subr.mxu0 0.0
    %1461 = vmatpush1.msra.mxu0 0.0
    %1462 = vmatprep.subr.mxu0 0.0
    %1463 = vmatpush1.msra.mxu0 0.0
    %1464 = vmatprep.subr.mxu0 0.0
    %1465 = vmatpush1.msra.mxu0 0.0
    %1466 = vmatprep.subr.mxu0 0.0
    %1467 = vmatpush1.msra.mxu0 0.0
    %1468 = vmatprep.subr.mxu0 0.0
    %1469 = vmatpush1.msra.mxu0 0.0
    %1470 = vmatprep.subr.mxu0 0.0
    %1471 = vmatpush1.msra.mxu0 0.0
    %1472 = vmatprep.subr.mxu0 0.0
    %1473 = vmatpush1.msra.mxu0 0.0
    %1474 = vmatprep.subr.mxu0 0.0
    %1475 = vmatpush1.msra.mxu0 0.0
    %1476 = vmatprep.subr.mxu0 0.0
    %1477 = vmatpush1.msra.mxu0 0.0
    %1478 = vmatprep.subr.mxu0 0.0
    %1479 = vmatpush1.msra.mxu0 0.0
    %1480 = vmatprep.subr.mxu0 0.0
    %1481 = vmatpush1.msra.mxu0 0.0
    %1482 = vmatprep.subr.mxu0 0.0
    %1483 = vmatpush1.msra.mxu0 0.0
    %1484 = vmatprep.subr.mxu0 0.0
    %1485 = vmatpush1.msra.mxu0 0.0
    %1486 = vmatprep.subr.mxu0 0.0
    %1487 = vmatpush1.msra.mxu0 0.0
    %1488 = vmatprep.subr.mxu0 0.0
    %1489 = vmatpush1.msra.mxu0 0.0
    %1490 = vmatprep.subr.mxu0 0.0
    %1491 = vmatpush1.msra.mxu0 0.0
    %1492 = vmatprep.subr.mxu0 0.0
    %1493 = vmatpush1.msra.mxu0 0.0
    %1494 = vmatprep.subr.mxu0 0.0
    %1495 = vmatpush1.msra.mxu0 0.0
    %1496 = vmatprep.subr.mxu0 0.0
    %1497 = vmatpush1.msra.mxu0 0.0
    %1498 = vmatprep.subr.mxu0 0.0
    %1499 = vmatpush1.msra.mxu0 0.0
    %1500 = vmatprep.subr.mxu0 0.0
    %1501 = vmatpush1.msra.mxu0 0.0
    %1502 = vmatprep.subr.mxu0 0.0
    %1503 = vmatpush1.msra.mxu0 0.0
    %1504 = vmatprep.subr.mxu0 0.0
    %1505 = vmatpush1.msra.mxu0 0.0
    %1506 = vmatprep.subr.mxu0 0.0
    %1507 = vmatpush1.msra.mxu0 0.0
    %1508 = vmatprep.subr.mxu0 0.0
    %1509 = vmatpush1.msra.mxu0 0.0
    %1510 = vmatprep.subr.mxu0 0.0
    %1511 = vmatpush1.msra.mxu0 0.0
    %1512 = vmatprep.mubr.f32.mxu0 0.0
    %1513 = vmatmul.mubr.f32.gmra.mrb[0].mxu0 %v1446
    %v1514 = vpop.f32.mrb[0].mxu0
    %v1515 = vadd.f32 %v1442, %v1514
    %v1516 = vpop.f32.mrb[0].mxu0
    %1517 = vdwg.mxu0
    %s1518 = scalar_lea.vmem %s7, 16
    %v1519 = vld [vmem:[%s1518] sm:$0xff]
    %v1521 = vsel %vm1214, %v1519, 0
    %1523 = vmatprep.subr.mxu0 0.0
    %1524 = vmatpush1.msra.mxu0 %v1211
    %1525 = vmatprep.subr.mxu0 0.0
    %1526 = vmatpush1.msra.mxu0 %v1212
    %1527 = vmatprep.subr.mxu0 0.0
    %1528 = vmatpush1.msra.mxu0 0.0
    %1529 = vmatprep.subr.mxu0 0.0
    %1530 = vmatpush1.msra.mxu0 0.0
    %1531 = vmatprep.subr.mxu0 0.0
    %1532 = vmatpush1.msra.mxu0 0.0
    %1533 = vmatprep.subr.mxu0 0.0
    %1534 = vmatpush1.msra.mxu0 0.0
    %1535 = vmatprep.subr.mxu0 0.0
    %1536 = vmatpush1.msra.mxu0 0.0
    %1537 = vmatprep.subr.mxu0 0.0
    %1538 = vmatpush1.msra.mxu0 0.0
    %1539 = vmatprep.subr.mxu0 0.0
    %1540 = vmatpush1.msra.mxu0 0.0
    %1541 = vmatprep.subr.mxu0 0.0
    %1542 = vmatpush1.msra.mxu0 0.0
    %1543 = vmatprep.subr.mxu0 0.0
    %1544 = vmatpush1.msra.mxu0 0.0
    %1545 = vmatprep.subr.mxu0 0.0
    %1546 = vmatpush1.msra.mxu0 0.0
    %1547 = vmatprep.subr.mxu0 0.0
    %1548 = vmatpush1.msra.mxu0 0.0
    %1549 = vmatprep.subr.mxu0 0.0
    %1550 = vmatpush1.msra.mxu0 0.0
    %1551 = vmatprep.subr.mxu0 0.0
    %1552 = vmatpush1.msra.mxu0 0.0
    %1553 = vmatprep.subr.mxu0 0.0
    %1554 = vmatpush1.msra.mxu0 0.0
    %1555 = vmatprep.subr.mxu0 0.0
    %1556 = vmatpush1.msra.mxu0 0.0
    %1557 = vmatprep.subr.mxu0 0.0
    %1558 = vmatpush1.msra.mxu0 0.0
    %1559 = vmatprep.subr.mxu0 0.0
    %1560 = vmatpush1.msra.mxu0 0.0
    %1561 = vmatprep.subr.mxu0 0.0
    %1562 = vmatpush1.msra.mxu0 0.0
    %1563 = vmatprep.subr.mxu0 0.0
    %1564 = vmatpush1.msra.mxu0 0.0
    %1565 = vmatprep.subr.mxu0 0.0
    %1566 = vmatpush1.msra.mxu0 0.0
    %1567 = vmatprep.subr.mxu0 0.0
    %1568 = vmatpush1.msra.mxu0 0.0
    %1569 = vmatprep.subr.mxu0 0.0
    %1570 = vmatpush1.msra.mxu0 0.0
    %1571 = vmatprep.subr.mxu0 0.0
    %1572 = vmatpush1.msra.mxu0 0.0
    %1573 = vmatprep.subr.mxu0 0.0
    %1574 = vmatpush1.msra.mxu0 0.0
    %1575 = vmatprep.subr.mxu0 0.0
    %1576 = vmatpush1.msra.mxu0 0.0
    %1577 = vmatprep.subr.mxu0 0.0
    %1578 = vmatpush1.msra.mxu0 0.0
    %1579 = vmatprep.subr.mxu0 0.0
    %1580 = vmatpush1.msra.mxu0 0.0
    %1581 = vmatprep.subr.mxu0 0.0
    %1582 = vmatpush1.msra.mxu0 0.0
    %1583 = vmatprep.subr.mxu0 0.0
    %1584 = vmatpush1.msra.mxu0 0.0
    %1585 = vmatprep.subr.mxu0 0.0
    %1586 = vmatpush1.msra.mxu0 0.0
    %1587 = vmatprep.mubr.f32.mxu0 0.0
    %1588 = vmatmul.mubr.f32.gmra.mrb[0].mxu0 %v1521
    %v1589 = vpop.f32.mrb[0].mxu0
    %v1590 = vadd.f32 0.0, %v1589
    %v1591 = vpop.f32.mrb[0].mxu0
    %1592 = vdwg.mxu0
    %s1593 = scalar_lea.vmem %s8, 64
    %v1594 = vld [vmem:[%s1593] sm:$0xff]
    %v1595 = vld [vmem:[%s1593 + $0x8] sm:$0xff]
    %v1596 = vld [vmem:[%s1593 + $0x10] sm:$0xff]
    %v1597 = vld [vmem:[%s1593 + $0x18] sm:$0xff]
    %v1599 = vsel %vm693, %v1590, 0
    %1601 = vmatprep.subr.mxu0 0.0
    %1602 = vmatpush1.msra.mxu0 %v1594
    %1603 = vmatprep.subr.mxu0 0.0
    %1604 = vmatpush1.msra.mxu0 %v1595
    %1605 = vmatprep.subr.mxu0 0.0
    %1606 = vmatpush1.msra.mxu0 %v1596
    %1607 = vmatprep.subr.mxu0 0.0
    %1608 = vmatpush1.msra.mxu0 %v1597
    %1609 = vmatprep.subr.mxu0 0.0
    %1610 = vmatpush1.msra.mxu0 0.0
    %1611 = vmatprep.subr.mxu0 0.0
    %1612 = vmatpush1.msra.mxu0 0.0
    %1613 = vmatprep.subr.mxu0 0.0
    %1614 = vmatpush1.msra.mxu0 0.0
    %1615 = vmatprep.subr.mxu0 0.0
    %1616 = vmatpush1.msra.mxu0 0.0
    %1617 = vmatprep.subr.mxu0 0.0
    %1618 = vmatpush1.msra.mxu0 0.0
    %1619 = vmatprep.subr.mxu0 0.0
    %1620 = vmatpush1.msra.mxu0 0.0
    %1621 = vmatprep.subr.mxu0 0.0
    %1622 = vmatpush1.msra.mxu0 0.0
    %1623 = vmatprep.subr.mxu0 0.0
    %1624 = vmatpush1.msra.mxu0 0.0
    %1625 = vmatprep.subr.mxu0 0.0
    %1626 = vmatpush1.msra.mxu0 0.0
    %1627 = vmatprep.subr.mxu0 0.0
    %1628 = vmatpush1.msra.mxu0 0.0
    %1629 = vmatprep.subr.mxu0 0.0
    %1630 = vmatpush1.msra.mxu0 0.0
    %1631 = vmatprep.subr.mxu0 0.0
    %1632 = vmatpush1.msra.mxu0 0.0
    %1633 = vmatprep.subr.mxu0 0.0
    %1634 = vmatpush1.msra.mxu0 0.0
    %1635 = vmatprep.subr.mxu0 0.0
    %1636 = vmatpush1.msra.mxu0 0.0
    %1637 = vmatprep.subr.mxu0 0.0
    %1638 = vmatpush1.msra.mxu0 0.0
    %1639 = vmatprep.subr.mxu0 0.0
    %1640 = vmatpush1.msra.mxu0 0.0
    %1641 = vmatprep.subr.mxu0 0.0
    %1642 = vmatpush1.msra.mxu0 0.0
    %1643 = vmatprep.subr.mxu0 0.0
    %1644 = vmatpush1.msra.mxu0 0.0
    %1645 = vmatprep.subr.mxu0 0.0
    %1646 = vmatpush1.msra.mxu0 0.0
    %1647 = vmatprep.subr.mxu0 0.0
    %1648 = vmatpush1.msra.mxu0 0.0
    %1649 = vmatprep.subr.mxu0 0.0
    %1650 = vmatpush1.msra.mxu0 0.0
    %1651 = vmatprep.subr.mxu0 0.0
    %1652 = vmatpush1.msra.mxu0 0.0
    %1653 = vmatprep.subr.mxu0 0.0
    %1654 = vmatpush1.msra.mxu0 0.0
    %1655 = vmatprep.subr.mxu0 0.0
    %1656 = vmatpush1.msra.mxu0 0.0
    %1657 = vmatprep.subr.mxu0 0.0
    %1658 = vmatpush1.msra.mxu0 0.0
    %1659 = vmatprep.subr.mxu0 0.0
    %1660 = vmatpush1.msra.mxu0 0.0
    %1661 = vmatprep.subr.mxu0 0.0
    %1662 = vmatpush1.msra.mxu0 0.0
    %1663 = vmatprep.subr.mxu0 0.0
    %1664 = vmatpush1.msra.mxu0 0.0
    %1665 = vmatprep.mubr.f32.mxu0 0.0
    %1666 = vmatmul.mubr.f32.gmra.mrb[0].mxu0 %v1599
    %v1667 = vpop.f32.mrb[0].mxu0
    %v1668 = vadd.f32 0.0, %v1667
    %v1669 = vpop.f32.mrb[0].mxu0
    %1670 = vdwg.mxu0
    %v1671 = vadd.f32 %v1515, %v1668
    %v1672 = vld [vmem:[%s9] sm:$0x1]
    %v1674 = vlaneseq
    %v1675 = vshrl.u32 %v1674, 7
    %v1676 = vsub.s32 0, %v1675
    %v1677 = vrot.slane %v1672, %v1676
    %v1679 = vadd.f32 %v1671, %v1677
    %v1680 = vmax.f32 %v1679, 0.0
    %v1681 = vld [vmem:[%s10] sm:$0x3]
    %vm1682 = vcmask 64512
    %v1684 = vsel %vm1682, %v1681, 0
    %1686 = vmatprep.subr.mxu0 0.0
    %1687 = vmatpush1.msra.mxu0 %v1680
    %1688 = vmatprep.subr.mxu0 0.0
    %1689 = vmatpush1.msra.mxu0 0.0
    %1690 = vmatprep.subr.mxu0 0.0
    %1691 = vmatpush1.msra.mxu0 0.0
    %1692 = vmatprep.subr.mxu0 0.0
    %1693 = vmatpush1.msra.mxu0 0.0
    %1694 = vmatprep.subr.mxu0 0.0
    %1695 = vmatpush1.msra.mxu0 0.0
    %1696 = vmatprep.subr.mxu0 0.0
    %1697 = vmatpush1.msra.mxu0 0.0
    %1698 = vmatprep.subr.mxu0 0.0
    %1699 = vmatpush1.msra.mxu0 0.0
    %1700 = vmatprep.subr.mxu0 0.0
    %1701 = vmatpush1.msra.mxu0 0.0
    %1702 = vmatprep.subr.mxu0 0.0
    %1703 = vmatpush1.msra.mxu0 0.0
    %1704 = vmatprep.subr.mxu0 0.0
    %1705 = vmatpush1.msra.mxu0 0.0
    %1706 = vmatprep.subr.mxu0 0.0
    %1707 = vmatpush1.msra.mxu0 0.0
    %1708 = vmatprep.subr.mxu0 0.0
    %1709 = vmatpush1.msra.mxu0 0.0
    %1710 = vmatprep.subr.mxu0 0.0
    %1711 = vmatpush1.msra.mxu0 0.0
    %1712 = vmatprep.subr.mxu0 0.0
    %1713 = vmatpush1.msra.mxu0 0.0
    %1714 = vmatprep.subr.mxu0 0.0
    %1715 = vmatpush1.msra.mxu0 0.0
    %1716 = vmatprep.subr.mxu0 0.0
    %1717 = vmatpush1.msra.mxu0 0.0
    %1718 = vmatprep.subr.mxu0 0.0
    %1719 = vmatpush1.msra.mxu0 0.0
    %1720 = vmatprep.subr.mxu0 0.0
    %1721 = vmatpush1.msra.mxu0 0.0
    %1722 = vmatprep.subr.mxu0 0.0
    %1723 = vmatpush1.msra.mxu0 0.0
    %1724 = vmatprep.subr.mxu0 0.0
    %1725 = vmatpush1.msra.mxu0 0.0
    %1726 = vmatprep.subr.mxu0 0.0
    %1727 = vmatpush1.msra.mxu0 0.0
    %1728 = vmatprep.subr.mxu0 0.0
    %1729 = vmatpush1.msra.mxu0 0.0
    %1730 = vmatprep.subr.mxu0 0.0
    %1731 = vmatpush1.msra.mxu0 0.0
    %1732 = vmatprep.subr.mxu0 0.0
    %1733 = vmatpush1.msra.mxu0 0.0
    %1734 = vmatprep.subr.mxu0 0.0
    %1735 = vmatpush1.msra.mxu0 0.0
    %1736 = vmatprep.subr.mxu0 0.0
    %1737 = vmatpush1.msra.mxu0 0.0
    %1738 = vmatprep.subr.mxu0 0.0
    %1739 = vmatpush1.msra.mxu0 0.0
    %1740 = vmatprep.subr.mxu0 0.0
    %1741 = vmatpush1.msra.mxu0 0.0
    %1742 = vmatprep.subr.mxu0 0.0
    %1743 = vmatpush1.msra.mxu0 0.0
    %1744 = vmatprep.subr.mxu0 0.0
    %1745 = vmatpush1.msra.mxu0 0.0
    %1746 = vmatprep.subr.mxu0 0.0
    %1747 = vmatpush1.msra.mxu0 0.0
    %1748 = vmatprep.subr.mxu0 0.0
    %1749 = vmatpush1.msra.mxu0 0.0
    %1750 = vmatprep.mubr.f32.mxu0 0.0
    %1751 = vmatmul.mubr.f32.gmra.mrb[0].mxu0 %v1684
    %v1752 = vpop.f32.mrb[0].mxu0
    %v1753 = vadd.f32 0.0, %v1752
    %v1754 = vpop.f32.mrb[0].mxu0
    %1755 = vdwg.mxu0
    %v1756 = vld [vmem:[%s11] sm:$0xff]
    %v1757 = vld [vmem:[%s11 + $0x8] sm:$0xff]
    %v1758 = vld [vmem:[%s11 + $0x10] sm:$0xff]
    %v1759 = vld [vmem:[%s11 + $0x18] sm:$0xff]
    %s1760 = scalar_lea.vmem %s10, 2
    %v1761 = vld [vmem:[%s1760] sm:$0x3]
    %v1763 = vsel %vm1682, %v1761, 0
    %1765 = vmatprep.subr.mxu0 0.0
    %1766 = vmatpush1.msra.mxu0 %v1680
    %1767 = vmatprep.subr.mxu0 0.0
    %1768 = vmatpush1.msra.mxu0 0.0
    %1769 = vmatprep.subr.mxu0 0.0
    %1770 = vmatpush1.msra.mxu0 0.0
    %1771 = vmatprep.subr.mxu0 0.0
    %1772 = vmatpush1.msra.mxu0 0.0
    %1773 = vmatprep.subr.mxu0 0.0
    %1774 = vmatpush1.msra.mxu0 0.0
    %1775 = vmatprep.subr.mxu0 0.0
    %1776 = vmatpush1.msra.mxu0 0.0
    %1777 = vmatprep.subr.mxu0 0.0
    %1778 = vmatpush1.msra.mxu0 0.0
    %1779 = vmatprep.subr.mxu0 0.0
    %1780 = vmatpush1.msra.mxu0 0.0
    %1781 = vmatprep.subr.mxu0 0.0
    %1782 = vmatpush1.msra.mxu0 0.0
    %1783 = vmatprep.subr.mxu0 0.0
    %1784 = vmatpush1.msra.mxu0 0.0
    %1785 = vmatprep.subr.mxu0 0.0
    %1786 = vmatpush1.msra.mxu0 0.0
    %1787 = vmatprep.subr.mxu0 0.0
    %1788 = vmatpush1.msra.mxu0 0.0
    %1789 = vmatprep.subr.mxu0 0.0
    %1790 = vmatpush1.msra.mxu0 0.0
    %1791 = vmatprep.subr.mxu0 0.0
    %1792 = vmatpush1.msra.mxu0 0.0
    %1793 = vmatprep.subr.mxu0 0.0
    %1794 = vmatpush1.msra.mxu0 0.0
    %1795 = vmatprep.subr.mxu0 0.0
    %1796 = vmatpush1.msra.mxu0 0.0
    %1797 = vmatprep.subr.mxu0 0.0
    %1798 = vmatpush1.msra.mxu0 0.0
    %1799 = vmatprep.subr.mxu0 0.0
    %1800 = vmatpush1.msra.mxu0 0.0
    %1801 = vmatprep.subr.mxu0 0.0
    %1802 = vmatpush1.msra.mxu0 0.0
    %1803 = vmatprep.subr.mxu0 0.0
    %1804 = vmatpush1.msra.mxu0 0.0
    %1805 = vmatprep.subr.mxu0 0.0
    %1806 = vmatpush1.msra.mxu0 0.0
    %1807 = vmatprep.subr.mxu0 0.0
    %1808 = vmatpush1.msra.mxu0 0.0
    %1809 = vmatprep.subr.mxu0 0.0
    %1810 = vmatpush1.msra.mxu0 0.0
    %1811 = vmatprep.subr.mxu0 0.0
    %1812 = vmatpush1.msra.mxu0 0.0
    %1813 = vmatprep.subr.mxu0 0.0
    %1814 = vmatpush1.msra.mxu0 0.0
    %1815 = vmatprep.subr.mxu0 0.0
    %1816 = vmatpush1.msra.mxu0 0.0
    %1817 = vmatprep.subr.mxu0 0.0
    %1818 = vmatpush1.msra.mxu0 0.0
    %1819 = vmatprep.subr.mxu0 0.0
    %1820 = vmatpush1.msra.mxu0 0.0
    %1821 = vmatprep.subr.mxu0 0.0
    %1822 = vmatpush1.msra.mxu0 0.0
    %1823 = vmatprep.subr.mxu0 0.0
    %1824 = vmatpush1.msra.mxu0 0.0
    %1825 = vmatprep.subr.mxu0 0.0
    %1826 = vmatpush1.msra.mxu0 0.0
    %1827 = vmatprep.subr.mxu0 0.0
    %1828 = vmatpush1.msra.mxu0 0.0
    %1829 = vmatprep.mubr.f32.mxu0 0.0
    %1830 = vmatmul.mubr.f32.gmra.mrb[0].mxu0 %v1763
    %v1831 = vpop.f32.mrb[0].mxu0
    %v1832 = vadd.f32 0.0, %v1831
    %v1833 = vpop.f32.mrb[0].mxu0
    %1834 = vdwg.mxu0
    %s1835 = scalar_lea.vmem %s11, 32
    %v1836 = vld [vmem:[%s1835] sm:$0xff]
    %v1837 = vld [vmem:[%s1835 + $0x8] sm:$0xff]
    %v1838 = vld [vmem:[%s1835 + $0x10] sm:$0xff]
    %v1839 = vld [vmem:[%s1835 + $0x18] sm:$0xff]
    %v1841 = vsel %vm693, %v1832, 0
    %1843 = vmatprep.subr.mxu0 0.0
    %1844 = vmatpush1.msra.mxu0 %v1836
    %1845 = vmatprep.subr.mxu0 0.0
    %1846 = vmatpush1.msra.mxu0 %v1837
    %1847 = vmatprep.subr.mxu0 0.0
    %1848 = vmatpush1.msra.mxu0 %v1838
    %1849 = vmatprep.subr.mxu0 0.0
    %1850 = vmatpush1.msra.mxu0 %v1839
    %1851 = vmatprep.subr.mxu0 0.0
    %1852 = vmatpush1.msra.mxu0 0.0
    %1853 = vmatprep.subr.mxu0 0.0
    %1854 = vmatpush1.msra.mxu0 0.0
    %1855 = vmatprep.subr.mxu0 0.0
    %1856 = vmatpush1.msra.mxu0 0.0
    %1857 = vmatprep.subr.mxu0 0.0
    %1858 = vmatpush1.msra.mxu0 0.0
    %1859 = vmatprep.subr.mxu0 0.0
    %1860 = vmatpush1.msra.mxu0 0.0
    %1861 = vmatprep.subr.mxu0 0.0
    %1862 = vmatpush1.msra.mxu0 0.0
    %1863 = vmatprep.subr.mxu0 0.0
    %1864 = vmatpush1.msra.mxu0 0.0
    %1865 = vmatprep.subr.mxu0 0.0
    %1866 = vmatpush1.msra.mxu0 0.0
    %1867 = vmatprep.subr.mxu0 0.0
    %1868 = vmatpush1.msra.mxu0 0.0
    %1869 = vmatprep.subr.mxu0 0.0
    %1870 = vmatpush1.msra.mxu0 0.0
    %1871 = vmatprep.subr.mxu0 0.0
    %1872 = vmatpush1.msra.mxu0 0.0
    %1873 = vmatprep.subr.mxu0 0.0
    %1874 = vmatpush1.msra.mxu0 0.0
    %1875 = vmatprep.subr.mxu0 0.0
    %1876 = vmatpush1.msra.mxu0 0.0
    %1877 = vmatprep.subr.mxu0 0.0
    %1878 = vmatpush1.msra.mxu0 0.0
    %1879 = vmatprep.subr.mxu0 0.0
    %1880 = vmatpush1.msra.mxu0 0.0
    %1881 = vmatprep.subr.mxu0 0.0
    %1882 = vmatpush1.msra.mxu0 0.0
    %1883 = vmatprep.subr.mxu0 0.0
    %1884 = vmatpush1.msra.mxu0 0.0
    %1885 = vmatprep.subr.mxu0 0.0
    %1886 = vmatpush1.msra.mxu0 0.0
    %1887 = vmatprep.subr.mxu0 0.0
    %1888 = vmatpush1.msra.mxu0 0.0
    %1889 = vmatprep.subr.mxu0 0.0
    %1890 = vmatpush1.msra.mxu0 0.0
    %1891 = vmatprep.subr.mxu0 0.0
    %1892 = vmatpush1.msra.mxu0 0.0
    %1893 = vmatprep.subr.mxu0 0.0
    %1894 = vmatpush1.msra.mxu0 0.0
    %1895 = vmatprep.subr.mxu0 0.0
    %1896 = vmatpush1.msra.mxu0 0.0
    %1897 = vmatprep.subr.mxu0 0.0
    %1898 = vmatpush1.msra.mxu0 0.0
    %1899 = vmatprep.subr.mxu0 0.0
    %1900 = vmatpush1.msra.mxu0 0.0
    %1901 = vmatprep.subr.mxu0 0.0
    %1902 = vmatpush1.msra.mxu0 0.0
    %1903 = vmatprep.subr.mxu0 0.0
    %1904 = vmatpush1.msra.mxu0 0.0
    %1905 = vmatprep.subr.mxu0 0.0
    %1906 = vmatpush1.msra.mxu0 0.0
    %1907 = vmatprep.mubr.f32.mxu0 0.0
    %1908 = vmatmul.mubr.f32.gmra.mrb[0].mxu0 %v1841
    %v1909 = vpop.f32.mrb[0].mxu0
    %v1910 = vadd.f32 0.0, %v1909
    %v1911 = vpop.f32.mrb[0].mxu0
    %1912 = vdwg.mxu0
    %v1914 = vsel %vm693, %v1753, 0
    %1916 = vmatprep.subr.mxu0 0.0
    %1917 = vmatpush1.msra.mxu0 %v1756
    %1918 = vmatprep.subr.mxu0 0.0
    %1919 = vmatpush1.msra.mxu0 %v1757
    %1920 = vmatprep.subr.mxu0 0.0
    %1921 = vmatpush1.msra.mxu0 %v1758
    %1922 = vmatprep.subr.mxu0 0.0
    %1923 = vmatpush1.msra.mxu0 %v1759
    %1924 = vmatprep.subr.mxu0 0.0
    %1925 = vmatpush1.msra.mxu0 0.0
    %1926 = vmatprep.subr.mxu0 0.0
    %1927 = vmatpush1.msra.mxu0 0.0
    %1928 = vmatprep.subr.mxu0 0.0
    %1929 = vmatpush1.msra.mxu0 0.0
    %1930 = vmatprep.subr.mxu0 0.0
    %1931 = vmatpush1.msra.mxu0 0.0
    %1932 = vmatprep.subr.mxu0 0.0
    %1933 = vmatpush1.msra.mxu0 0.0
    %1934 = vmatprep.subr.mxu0 0.0
    %1935 = vmatpush1.msra.mxu0 0.0
    %1936 = vmatprep.subr.mxu0 0.0
    %1937 = vmatpush1.msra.mxu0 0.0
    %1938 = vmatprep.subr.mxu0 0.0
    %1939 = vmatpush1.msra.mxu0 0.0
    %1940 = vmatprep.subr.mxu0 0.0
    %1941 = vmatpush1.msra.mxu0 0.0
    %1942 = vmatprep.subr.mxu0 0.0
    %1943 = vmatpush1.msra.mxu0 0.0
    %1944 = vmatprep.subr.mxu0 0.0
    %1945 = vmatpush1.msra.mxu0 0.0
    %1946 = vmatprep.subr.mxu0 0.0
    %1947 = vmatpush1.msra.mxu0 0.0
    %1948 = vmatprep.subr.mxu0 0.0
    %1949 = vmatpush1.msra.mxu0 0.0
    %1950 = vmatprep.subr.mxu0 0.0
    %1951 = vmatpush1.msra.mxu0 0.0
    %1952 = vmatprep.subr.mxu0 0.0
    %1953 = vmatpush1.msra.mxu0 0.0
    %1954 = vmatprep.subr.mxu0 0.0
    %1955 = vmatpush1.msra.mxu0 0.0
    %1956 = vmatprep.subr.mxu0 0.0
    %1957 = vmatpush1.msra.mxu0 0.0
    %1958 = vmatprep.subr.mxu0 0.0
    %1959 = vmatpush1.msra.mxu0 0.0
    %1960 = vmatprep.subr.mxu0 0.0
    %1961 = vmatpush1.msra.mxu0 0.0
    %1962 = vmatprep.subr.mxu0 0.0
    %1963 = vmatpush1.msra.mxu0 0.0
    %1964 = vmatprep.subr.mxu0 0.0
    %1965 = vmatpush1.msra.mxu0 0.0
    %1966 = vmatprep.subr.mxu0 0.0
    %1967 = vmatpush1.msra.mxu0 0.0
    %1968 = vmatprep.subr.mxu0 0.0
    %1969 = vmatpush1.msra.mxu0 0.0
    %1970 = vmatprep.subr.mxu0 0.0
    %1971 = vmatpush1.msra.mxu0 0.0
    %1972 = vmatprep.subr.mxu0 0.0
    %1973 = vmatpush1.msra.mxu0 0.0
    %1974 = vmatprep.subr.mxu0 0.0
    %1975 = vmatpush1.msra.mxu0 0.0
    %1976 = vmatprep.subr.mxu0 0.0
    %1977 = vmatpush1.msra.mxu0 0.0
    %1978 = vmatprep.subr.mxu0 0.0
    %1979 = vmatpush1.msra.mxu0 0.0
    %1980 = vmatprep.mubr.f32.mxu0 0.0
    %1981 = vmatmul.mubr.f32.gmra.mrb[0].mxu0 %v1914
    %v1982 = vpop.f32.mrb[0].mxu0
    %v1983 = vadd.f32 %v1910, %v1982
    %v1984 = vpop.f32.mrb[0].mxu0
    %1985 = vdwg.mxu0
    %s1986 = scalar_lea.vmem %s10, 4
    %v1987 = vld [vmem:[%s1986] sm:$0x3]
    %v1989 = vsel %vm1682, %v1987, 0
    %1991 = vmatprep.subr.mxu0 0.0
    %1992 = vmatpush1.msra.mxu0 %v1680
    %1993 = vmatprep.subr.mxu0 0.0
    %1994 = vmatpush1.msra.mxu0 0.0
    %1995 = vmatprep.subr.mxu0 0.0
    %1996 = vmatpush1.msra.mxu0 0.0
    %1997 = vmatprep.subr.mxu0 0.0
    %1998 = vmatpush1.msra.mxu0 0.0
    %1999 = vmatprep.subr.mxu0 0.0
    %2000 = vmatpush1.msra.mxu0 0.0
    %2001 = vmatprep.subr.mxu0 0.0
    %2002 = vmatpush1.msra.mxu0 0.0
    %2003 = vmatprep.subr.mxu0 0.0
    %2004 = vmatpush1.msra.mxu0 0.0
    %2005 = vmatprep.subr.mxu0 0.0
    %2006 = vmatpush1.msra.mxu0 0.0
    %2007 = vmatprep.subr.mxu0 0.0
    %2008 = vmatpush1.msra.mxu0 0.0
    %2009 = vmatprep.subr.mxu0 0.0
    %2010 = vmatpush1.msra.mxu0 0.0
    %2011 = vmatprep.subr.mxu0 0.0
    %2012 = vmatpush1.msra.mxu0 0.0
    %2013 = vmatprep.subr.mxu0 0.0
    %2014 = vmatpush1.msra.mxu0 0.0
    %2015 = vmatprep.subr.mxu0 0.0
    %2016 = vmatpush1.msra.mxu0 0.0
    %2017 = vmatprep.subr.mxu0 0.0
    %2018 = vmatpush1.msra.mxu0 0.0
    %2019 = vmatprep.subr.mxu0 0.0
    %2020 = vmatpush1.msra.mxu0 0.0
    %2021 = vmatprep.subr.mxu0 0.0
    %2022 = vmatpush1.msra.mxu0 0.0
    %2023 = vmatprep.subr.mxu0 0.0
    %2024 = vmatpush1.msra.mxu0 0.0
    %2025 = vmatprep.subr.mxu0 0.0
    %2026 = vmatpush1.msra.mxu0 0.0
    %2027 = vmatprep.subr.mxu0 0.0
    %2028 = vmatpush1.msra.mxu0 0.0
    %2029 = vmatprep.subr.mxu0 0.0
    %2030 = vmatpush1.msra.mxu0 0.0
    %2031 = vmatprep.subr.mxu0 0.0
    %2032 = vmatpush1.msra.mxu0 0.0
    %2033 = vmatprep.subr.mxu0 0.0
    %2034 = vmatpush1.msra.mxu0 0.0
    %2035 = vmatprep.subr.mxu0 0.0
    %2036 = vmatpush1.msra.mxu0 0.0
    %2037 = vmatprep.subr.mxu0 0.0
    %2038 = vmatpush1.msra.mxu0 0.0
    %2039 = vmatprep.subr.mxu0 0.0
    %2040 = vmatpush1.msra.mxu0 0.0
    %2041 = vmatprep.subr.mxu0 0.0
    %2042 = vmatpush1.msra.mxu0 0.0
    %2043 = vmatprep.subr.mxu0 0.0
    %2044 = vmatpush1.msra.mxu0 0.0
    %2045 = vmatprep.subr.mxu0 0.0
    %2046 = vmatpush1.msra.mxu0 0.0
    %2047 = vmatprep.subr.mxu0 0.0
    %2048 = vmatpush1.msra.mxu0 0.0
    %2049 = vmatprep.subr.mxu0 0.0
    %2050 = vmatpush1.msra.mxu0 0.0
    %2051 = vmatprep.subr.mxu0 0.0
    %2052 = vmatpush1.msra.mxu0 0.0
    %2053 = vmatprep.subr.mxu0 0.0
    %2054 = vmatpush1.msra.mxu0 0.0
    %2055 = vmatprep.mubr.f32.mxu0 0.0
    %2056 = vmatmul.mubr.f32.gmra.mrb[0].mxu0 %v1989
    %v2057 = vpop.f32.mrb[0].mxu0
    %v2058 = vadd.f32 0.0, %v2057
    %v2059 = vpop.f32.mrb[0].mxu0
    %2060 = vdwg.mxu0
    %s2061 = scalar_lea.vmem %s11, 64
    %v2062 = vld [vmem:[%s2061] sm:$0xff]
    %v2063 = vld [vmem:[%s2061 + $0x8] sm:$0xff]
    %v2064 = vld [vmem:[%s2061 + $0x10] sm:$0xff]
    %v2065 = vld [vmem:[%s2061 + $0x18] sm:$0xff]
    %v2067 = vsel %vm693, %v2058, 0
    %2069 = vmatprep.subr.mxu0 0.0
    %2070 = vmatpush1.msra.mxu0 %v2062
    %2071 = vmatprep.subr.mxu0 0.0
    %2072 = vmatpush1.msra.mxu0 %v2063
    %2073 = vmatprep.subr.mxu0 0.0
    %2074 = vmatpush1.msra.mxu0 %v2064
    %2075 = vmatprep.subr.mxu0 0.0
    %2076 = vmatpush1.msra.mxu0 %v2065
    %2077 = vmatprep.subr.mxu0 0.0
    %2078 = vmatpush1.msra.mxu0 0.0
    %2079 = vmatprep.subr.mxu0 0.0
    %2080 = vmatpush1.msra.mxu0 0.0
    %2081 = vmatprep.subr.mxu0 0.0
    %2082 = vmatpush1.msra.mxu0 0.0
    %2083 = vmatprep.subr.mxu0 0.0
    %2084 = vmatpush1.msra.mxu0 0.0
    %2085 = vmatprep.subr.mxu0 0.0
    %2086 = vmatpush1.msra.mxu0 0.0
    %2087 = vmatprep.subr.mxu0 0.0
    %2088 = vmatpush1.msra.mxu0 0.0
    %2089 = vmatprep.subr.mxu0 0.0
    %2090 = vmatpush1.msra.mxu0 0.0
    %2091 = vmatprep.subr.mxu0 0.0
    %2092 = vmatpush1.msra.mxu0 0.0
    %2093 = vmatprep.subr.mxu0 0.0
    %2094 = vmatpush1.msra.mxu0 0.0
    %2095 = vmatprep.subr.mxu0 0.0
    %2096 = vmatpush1.msra.mxu0 0.0
    %2097 = vmatprep.subr.mxu0 0.0
    %2098 = vmatpush1.msra.mxu0 0.0
    %2099 = vmatprep.subr.mxu0 0.0
    %2100 = vmatpush1.msra.mxu0 0.0
    %2101 = vmatprep.subr.mxu0 0.0
    %2102 = vmatpush1.msra.mxu0 0.0
    %2103 = vmatprep.subr.mxu0 0.0
    %2104 = vmatpush1.msra.mxu0 0.0
    %2105 = vmatprep.subr.mxu0 0.0
    %2106 = vmatpush1.msra.mxu0 0.0
    %2107 = vmatprep.subr.mxu0 0.0
    %2108 = vmatpush1.msra.mxu0 0.0
    %2109 = vmatprep.subr.mxu0 0.0
    %2110 = vmatpush1.msra.mxu0 0.0
    %2111 = vmatprep.subr.mxu0 0.0
    %2112 = vmatpush1.msra.mxu0 0.0
    %2113 = vmatprep.subr.mxu0 0.0
    %2114 = vmatpush1.msra.mxu0 0.0
    %2115 = vmatprep.subr.mxu0 0.0
    %2116 = vmatpush1.msra.mxu0 0.0
    %2117 = vmatprep.subr.mxu0 0.0
    %2118 = vmatpush1.msra.mxu0 0.0
    %2119 = vmatprep.subr.mxu0 0.0
    %2120 = vmatpush1.msra.mxu0 0.0
    %2121 = vmatprep.subr.mxu0 0.0
    %2122 = vmatpush1.msra.mxu0 0.0
    %2123 = vmatprep.subr.mxu0 0.0
    %2124 = vmatpush1.msra.mxu0 0.0
    %2125 = vmatprep.subr.mxu0 0.0
    %2126 = vmatpush1.msra.mxu0 0.0
    %2127 = vmatprep.subr.mxu0 0.0
    %2128 = vmatpush1.msra.mxu0 0.0
    %2129 = vmatprep.subr.mxu0 0.0
    %2130 = vmatpush1.msra.mxu0 0.0
    %2131 = vmatprep.subr.mxu0 0.0
    %2132 = vmatpush1.msra.mxu0 0.0
    %2133 = vmatprep.mubr.f32.mxu0 0.0
    %2134 = vmatmul.mubr.f32.gmra.mrb[0].mxu0 %v2067
    %v2135 = vpop.f32.mrb[0].mxu0
    %v2136 = vadd.f32 0.0, %v2135
    %v2137 = vpop.f32.mrb[0].mxu0
    %2138 = vdwg.mxu0
    %v2139 = vadd.f32 %v1983, %v2136
    %s2140 = scalar_lea.vmem %s10, 6
    %v2141 = vld [vmem:[%s2140] sm:$0x3]
    %v2143 = vsel %vm1682, %v2141, 0
    %2145 = vmatprep.subr.mxu0 0.0
    %2146 = vmatpush1.msra.mxu0 %v1680
    %2147 = vmatprep.subr.mxu0 0.0
    %2148 = vmatpush1.msra.mxu0 0.0
    %2149 = vmatprep.subr.mxu0 0.0
    %2150 = vmatpush1.msra.mxu0 0.0
    %2151 = vmatprep.subr.mxu0 0.0
    %2152 = vmatpush1.msra.mxu0 0.0
    %2153 = vmatprep.subr.mxu0 0.0
    %2154 = vmatpush1.msra.mxu0 0.0
    %2155 = vmatprep.subr.mxu0 0.0
    %2156 = vmatpush1.msra.mxu0 0.0
    %2157 = vmatprep.subr.mxu0 0.0
    %2158 = vmatpush1.msra.mxu0 0.0
    %2159 = vmatprep.subr.mxu0 0.0
    %2160 = vmatpush1.msra.mxu0 0.0
    %2161 = vmatprep.subr.mxu0 0.0
    %2162 = vmatpush1.msra.mxu0 0.0
    %2163 = vmatprep.subr.mxu0 0.0
    %2164 = vmatpush1.msra.mxu0 0.0
    %2165 = vmatprep.subr.mxu0 0.0
    %2166 = vmatpush1.msra.mxu0 0.0
    %2167 = vmatprep.subr.mxu0 0.0
    %2168 = vmatpush1.msra.mxu0 0.0
    %2169 = vmatprep.subr.mxu0 0.0
    %2170 = vmatpush1.msra.mxu0 0.0
    %2171 = vmatprep.subr.mxu0 0.0
    %2172 = vmatpush1.msra.mxu0 0.0
    %2173 = vmatprep.subr.mxu0 0.0
    %2174 = vmatpush1.msra.mxu0 0.0
    %2175 = vmatprep.subr.mxu0 0.0
    %2176 = vmatpush1.msra.mxu0 0.0
    %2177 = vmatprep.subr.mxu0 0.0
    %2178 = vmatpush1.msra.mxu0 0.0
    %2179 = vmatprep.subr.mxu0 0.0
    %2180 = vmatpush1.msra.mxu0 0.0
    %2181 = vmatprep.subr.mxu0 0.0
    %2182 = vmatpush1.msra.mxu0 0.0
    %2183 = vmatprep.subr.mxu0 0.0
    %2184 = vmatpush1.msra.mxu0 0.0
    %2185 = vmatprep.subr.mxu0 0.0
    %2186 = vmatpush1.msra.mxu0 0.0
    %2187 = vmatprep.subr.mxu0 0.0
    %2188 = vmatpush1.msra.mxu0 0.0
    %2189 = vmatprep.subr.mxu0 0.0
    %2190 = vmatpush1.msra.mxu0 0.0
    %2191 = vmatprep.subr.mxu0 0.0
    %2192 = vmatpush1.msra.mxu0 0.0
    %2193 = vmatprep.subr.mxu0 0.0
    %2194 = vmatpush1.msra.mxu0 0.0
    %2195 = vmatprep.subr.mxu0 0.0
    %2196 = vmatpush1.msra.mxu0 0.0
    %2197 = vmatprep.subr.mxu0 0.0
    %2198 = vmatpush1.msra.mxu0 0.0
    %2199 = vmatprep.subr.mxu0 0.0
    %2200 = vmatpush1.msra.mxu0 0.0
    %2201 = vmatprep.subr.mxu0 0.0
    %2202 = vmatpush1.msra.mxu0 0.0
    %2203 = vmatprep.subr.mxu0 0.0
    %2204 = vmatpush1.msra.mxu0 0.0
    %2205 = vmatprep.subr.mxu0 0.0
    %2206 = vmatpush1.msra.mxu0 0.0
    %2207 = vmatprep.subr.mxu0 0.0
    %2208 = vmatpush1.msra.mxu0 0.0
    %2209 = vmatprep.mubr.f32.mxu0 0.0
    %2210 = vmatmul.mubr.f32.gmra.mrb[0].mxu0 %v2143
    %v2211 = vpop.f32.mrb[0].mxu0
    %v2212 = vadd.f32 0.0, %v2211
    %v2213 = vpop.f32.mrb[0].mxu0
    %2214 = vdwg.mxu0
    %s2215 = scalar_lea.vmem %s11, 96
    %v2216 = vld [vmem:[%s2215] sm:$0xff]
    %v2217 = vld [vmem:[%s2215 + $0x8] sm:$0xff]
    %v2218 = vld [vmem:[%s2215 + $0x10] sm:$0xff]
    %v2219 = vld [vmem:[%s2215 + $0x18] sm:$0xff]
    %v2221 = vsel %vm693, %v2212, 0
    %2223 = vmatprep.subr.mxu0 0.0
    %2224 = vmatpush1.msra.mxu0 %v2216
    %2225 = vmatprep.subr.mxu0 0.0
    %2226 = vmatpush1.msra.mxu0 %v2217
    %2227 = vmatprep.subr.mxu0 0.0
    %2228 = vmatpush1.msra.mxu0 %v2218
    %2229 = vmatprep.subr.mxu0 0.0
    %2230 = vmatpush1.msra.mxu0 %v2219
    %2231 = vmatprep.subr.mxu0 0.0
    %2232 = vmatpush1.msra.mxu0 0.0
    %2233 = vmatprep.subr.mxu0 0.0
    %2234 = vmatpush1.msra.mxu0 0.0
    %2235 = vmatprep.subr.mxu0 0.0
    %2236 = vmatpush1.msra.mxu0 0.0
    %2237 = vmatprep.subr.mxu0 0.0
    %2238 = vmatpush1.msra.mxu0 0.0
    %2239 = vmatprep.subr.mxu0 0.0
    %2240 = vmatpush1.msra.mxu0 0.0
    %2241 = vmatprep.subr.mxu0 0.0
    %2242 = vmatpush1.msra.mxu0 0.0
    %2243 = vmatprep.subr.mxu0 0.0
    %2244 = vmatpush1.msra.mxu0 0.0
    %2245 = vmatprep.subr.mxu0 0.0
    %2246 = vmatpush1.msra.mxu0 0.0
    %2247 = vmatprep.subr.mxu0 0.0
    %2248 = vmatpush1.msra.mxu0 0.0
    %2249 = vmatprep.subr.mxu0 0.0
    %2250 = vmatpush1.msra.mxu0 0.0
    %2251 = vmatprep.subr.mxu0 0.0
    %2252 = vmatpush1.msra.mxu0 0.0
    %2253 = vmatprep.subr.mxu0 0.0
    %2254 = vmatpush1.msra.mxu0 0.0
    %2255 = vmatprep.subr.mxu0 0.0
    %2256 = vmatpush1.msra.mxu0 0.0
    %2257 = vmatprep.subr.mxu0 0.0
    %2258 = vmatpush1.msra.mxu0 0.0
    %2259 = vmatprep.subr.mxu0 0.0
    %2260 = vmatpush1.msra.mxu0 0.0
    %2261 = vmatprep.subr.mxu0 0.0
    %2262 = vmatpush1.msra.mxu0 0.0
    %2263 = vmatprep.subr.mxu0 0.0
    %2264 = vmatpush1.msra.mxu0 0.0
    %2265 = vmatprep.subr.mxu0 0.0
    %2266 = vmatpush1.msra.mxu0 0.0
    %2267 = vmatprep.subr.mxu0 0.0
    %2268 = vmatpush1.msra.mxu0 0.0
    %2269 = vmatprep.subr.mxu0 0.0
    %2270 = vmatpush1.msra.mxu0 0.0
    %2271 = vmatprep.subr.mxu0 0.0
    %2272 = vmatpush1.msra.mxu0 0.0
    %2273 = vmatprep.subr.mxu0 0.0
    %2274 = vmatpush1.msra.mxu0 0.0
    %2275 = vmatprep.subr.mxu0 0.0
    %2276 = vmatpush1.msra.mxu0 0.0
    %2277 = vmatprep.subr.mxu0 0.0
    %2278 = vmatpush1.msra.mxu0 0.0
    %2279 = vmatprep.subr.mxu0 0.0
    %2280 = vmatpush1.msra.mxu0 0.0
    %2281 = vmatprep.subr.mxu0 0.0
    %2282 = vmatpush1.msra.mxu0 0.0
    %2283 = vmatprep.subr.mxu0 0.0
    %2284 = vmatpush1.msra.mxu0 0.0
    %2285 = vmatprep.subr.mxu0 0.0
    %2286 = vmatpush1.msra.mxu0 0.0
    %2287 = vmatprep.mubr.f32.mxu0 0.0
    %2288 = vmatmul.mubr.f32.gmra.mrb[0].mxu0 %v2221
    %v2289 = vpop.f32.mrb[0].mxu0
    %v2290 = vadd.f32 0.0, %v2289
    %v2291 = vpop.f32.mrb[0].mxu0
    %2292 = vdwg.mxu0
    %v2293 = vadd.f32 %v2139, %v2290
    %v2294 = vld [vmem:[%s12] sm:$0x1]
    %v2296 = vlaneseq
    %v2297 = vshrl.u32 %v2296, 7
    %v2298 = vsub.s32 0, %v2297
    %v2299 = vrot.slane %v2294, %v2298
    %v2301 = vadd.f32 %v2293, %v2299
    %v2302 = vmax.f32 %v2301, 0.0
    %v2303 = vld [vmem:[%s13] sm:$0xff]
    %v2304 = vld [vmem:[%s13 + $0x8] sm:$0xff]
    %v2305 = vld [vmem:[%s13 + $0x10] sm:$0xff]
    %v2306 = vld [vmem:[%s13 + $0x18] sm:$0xff]
    %v2307 = vld [vmem:[%s13 + $0x20] sm:$0xff]
    %v2308 = vld [vmem:[%s13 + $0x28] sm:$0xff]
    %v2309 = vld [vmem:[%s13 + $0x30] sm:$0xff]
    %v2310 = vld [vmem:[%s13 + $0x38] sm:$0xff]
    %v2311 = vld [vmem:[%s13 + $0x40] sm:$0xff]
    %v2312 = vld [vmem:[%s13 + $0x48] sm:$0xff]
    %v2313 = vld [vmem:[%s13 + $0x50] sm:$0xff]
    %v2314 = vld [vmem:[%s13 + $0x58] sm:$0xff]
    %v2315 = vld [vmem:[%s13 + $0x60] sm:$0xff]
    %v2316 = vld [vmem:[%s13 + $0x68] sm:$0xff]
    %v2317 = vld [vmem:[%s13 + $0x70] sm:$0xff]
    %v2318 = vld [vmem:[%s13 + $0x78] sm:$0xff]
    %v2319 = vld [vmem:[%s14] sm:$0x1]
    %v2321 = vlaneseq
    %v2322 = vshrl.u32 %v2321, 7
    %v2323 = vsub.s32 0, %v2322
    %v2324 = vrot.slane %v2319, %v2323
    %2326 = vmatprep.subr.mxu0 0.0
    %2327 = vmatpush1.msra.mxu0 %v2303
    %2328 = vmatprep.subr.mxu0 0.0
    %2329 = vmatpush1.msra.mxu0 %v2304
    %2330 = vmatprep.subr.mxu0 0.0
    %2331 = vmatpush1.msra.mxu0 %v2305
    %2332 = vmatprep.subr.mxu0 0.0
    %2333 = vmatpush1.msra.mxu0 %v2306
    %2334 = vmatprep.subr.mxu0 0.0
    %2335 = vmatpush1.msra.mxu0 %v2307
    %2336 = vmatprep.subr.mxu0 0.0
    %2337 = vmatpush1.msra.mxu0 %v2308
    %2338 = vmatprep.subr.mxu0 0.0
    %2339 = vmatpush1.msra.mxu0 %v2309
    %2340 = vmatprep.subr.mxu0 0.0
    %2341 = vmatpush1.msra.mxu0 %v2310
    %2342 = vmatprep.subr.mxu0 0.0
    %2343 = vmatpush1.msra.mxu0 %v2311
    %2344 = vmatprep.subr.mxu0 0.0
    %2345 = vmatpush1.msra.mxu0 %v2312
    %2346 = vmatprep.subr.mxu0 0.0
    %2347 = vmatpush1.msra.mxu0 %v2313
    %2348 = vmatprep.subr.mxu0 0.0
    %2349 = vmatpush1.msra.mxu0 %v2314
    %2350 = vmatprep.subr.mxu0 0.0
    %2351 = vmatpush1.msra.mxu0 %v2315
    %2352 = vmatprep.subr.mxu0 0.0
    %2353 = vmatpush1.msra.mxu0 %v2316
    %2354 = vmatprep.subr.mxu0 0.0
    %2355 = vmatpush1.msra.mxu0 %v2317
    %2356 = vmatprep.subr.mxu0 0.0
    %2357 = vmatpush1.msra.mxu0 %v2318
    %2358 = vmatprep.subr.mxu0 0.0
    %2359 = vmatpush1.msra.mxu0 0.0
    %2360 = vmatprep.subr.mxu0 0.0
    %2361 = vmatpush1.msra.mxu0 0.0
    %2362 = vmatprep.subr.mxu0 0.0
    %2363 = vmatpush1.msra.mxu0 0.0
    %2364 = vmatprep.subr.mxu0 0.0
    %2365 = vmatpush1.msra.mxu0 0.0
    %2366 = vmatprep.subr.mxu0 0.0
    %2367 = vmatpush1.msra.mxu0 0.0
    %2368 = vmatprep.subr.mxu0 0.0
    %2369 = vmatpush1.msra.mxu0 0.0
    %2370 = vmatprep.subr.mxu0 0.0
    %2371 = vmatpush1.msra.mxu0 0.0
    %2372 = vmatprep.subr.mxu0 0.0
    %2373 = vmatpush1.msra.mxu0 0.0
    %2374 = vmatprep.subr.mxu0 0.0
    %2375 = vmatpush1.msra.mxu0 0.0
    %2376 = vmatprep.subr.mxu0 0.0
    %2377 = vmatpush1.msra.mxu0 0.0
    %2378 = vmatprep.subr.mxu0 0.0
    %2379 = vmatpush1.msra.mxu0 0.0
    %2380 = vmatprep.subr.mxu0 0.0
    %2381 = vmatpush1.msra.mxu0 0.0
    %2382 = vmatprep.subr.mxu0 0.0
    %2383 = vmatpush1.msra.mxu0 0.0
    %2384 = vmatprep.subr.mxu0 0.0
    %2385 = vmatpush1.msra.mxu0 0.0
    %2386 = vmatprep.subr.mxu0 0.0
    %2387 = vmatpush1.msra.mxu0 0.0
    %2388 = vmatprep.subr.mxu0 0.0
    %2389 = vmatpush1.msra.mxu0 0.0
    %2390 = vmatprep.mubr.f32.mxu0 0.0
    %2391 = vmatmul.mubr.f32.gmra.mrb[0].mxu0 %v2302
    %v2392 = vpop.f32.mrb[0].mxu0
    %v2393 = vadd.f32 %v2324, %v2392
    %v2394 = vpop.f32.mrb[0].mxu0
    %2395 = vdwg.mxu0
    %2396 = vst [vmem:[#allocation2] sm:$0x3] %v2393
    // Predicated region
    $region62: #{model_forward.1} parent=1 // pred_check
      _
    $region63: #{model_forward.1} parent=1 // pred_check_branch
      %2398 = sbr.rel (0) target = $region65
    $region64: #{model_forward.1} parent=1 // pred_region
      %s2400 = ssub.s32 32, 32
      %2401 = vsyncadd [#allocation3], %s2400
      %s2403 = sshll.u32 [#allocation2], 4
      %s2404 = int_to_ptr.vmem [resolvable:$true] %s2403
      %2406 = dma.vmem_to_hbm [thread:$0]  %s2404, 32, %s15, [#allocation3]
    $region65: #{model_forward.1} parent=1 // pred_fallthru
      _
    // Predicated region
    $region66: #{model_forward.1} parent=1 // pred_check
      _
    $region67: #{model_forward.1} parent=1 // pred_check_branch
      %2408 = sbr.rel (0) target = $region69
    $region68: #{model_forward.1} parent=1 // pred_region
      %2409 = dma.done [#allocation3], 32
    $region69: #{model_forward.1} parent=1 // pred_fallthru
      _
    %2410 = vsyncpa [#allocation3], 1

</llo_original>
